<compile_context>
chip_gen: v7x
topology: tpu7x:2x2x1
jax: 0.10.0
libtpu: 0.0.40
codegen_flags: <defaults>
</compile_context>

<pallas_src>
import numpy as np
import jax
import jax.numpy as jnp
from jax.experimental import pallas as pl
from jax.experimental.pallas import tpu as pltpu

EPS = 1e-5
MXU_INPUT_DTYPE = jnp.float32   # bf16 on v6e/v7x once the tolerance is re-verified


# ---------------------------------------------------------------------------
# Pallas kernels
# ---------------------------------------------------------------------------

def conv_sd_kernel(z_ref, w_ref, b_ref, y_ref, mom_ref):
    """Strided KxK conv of a space-to-depth tile as ONE wide-K MXU matmul.

    z_ref  : (bt, ho+1, wo+1, cz)   space-to-depth input, cz = s*s*Cin
    w_ref  : (4*cz, Cout)           folded weights, shift order (0,0),(0,1),(1,0),(1,1)
    b_ref  : (1, Cout)              conv bias
    y_ref  : (bt, ho*wo, Cout)      raw conv output (pre-BN)
    mom_ref: (1, 2, Cout)           per-block [sum, sum of sq-devs about block mean]
    """
    bt, hz, wz, cz = z_ref.shape
    ho, wo = hz - 1, wz - 1
    cout = y_ref.shape[-1]
    m = bt * ho * wo

    # Concatenate the four shifted windows along lanes -> contraction dim 4*cz
    # (64 / 128 / 256 here): one full systolic pass instead of four shallow ones.
    parts = [z_ref[:, pl.ds(di, ho), pl.ds(dj, wo), :].reshape(m, cz)
             for di in (0, 1) for dj in (0, 1)]
    zz = jnp.concatenate(parts, axis=-1)                       # (m, 4*cz)
    acc = jnp.dot(zz, w_ref[...], preferred_element_type=jnp.float32)
    acc = acc + b_ref[...]                                     # (1, cout) broadcast
    y_ref[...] = acc.reshape(bt, ho * wo, cout).astype(y_ref.dtype)

    # Single-pass BN moments centered about the block mean (robust two-level
    # variance; avoids the E[x^2]-E[x]^2 cancellation flagged in review).
    s = jnp.sum(acc, axis=0, keepdims=True)                    # (1, cout)
    d = acc - s * (1.0 / m)
    m2 = jnp.sum(d * d, axis=0, keepdims=True)                 # (1, cout)
    mom_ref[...] = jnp.concatenate([s, m2], axis=0)[None]      # (1, 2, cout)


def bn_relu_add_kernel(yc_ref, ys_ref, scc_ref, shc_ref, scs_ref, shs_ref, o_ref):
    """Fused epilogue: BN+ReLU on both conv branches + residual add, one HBM sweep.
    All operands are lane-dense (minor dim = s_out*Cout); scale/shift are pre-tiled
    to the same length (period Cout along lanes)."""
    a = jnp.maximum(yc_ref[...] * scc_ref[...] + shc_ref[...], 0.0)
    b = jnp.maximum(ys_ref[...] * scs_ref[...] + shs_ref[...], 0.0)
    o_ref[...] = (a + b).astype(o_ref.dtype)


# ---------------------------------------------------------------------------
# Wrapper glue (layout plumbing + tiny scalar math only)
# ---------------------------------------------------------------------------

def _round_up(x, m):
    return (x + m - 1) // m * m


def _vmem_limit_bytes():
    """Scoped-VMEM request: ~70% of physical VMEM, clamped to [32, 96] MiB.
    v5e/v6e (128 MiB) -> ~90 MiB; v7x (64 MiB per TC) -> ~45 MiB (< 48 MiB cap)."""
    cap = 128 * 1024 * 1024
    try:
        cap = int(getattr(pltpu.get_tpu_info(), "vmem_capacity_bytes", cap))
    except Exception:
        pass
    return max(32 * 1024 * 1024, min(96 * 1024 * 1024, int(cap * 0.7)))


def _frame_vmem_bytes(*frame_shapes, itemsize=4):
    """Padded VMEM bytes for one batch-frame's worth of blocks: minor dim pads to
    128 lanes, second-minor to 8 sublanes (Mosaic (8,128) f32 tiling)."""
    total = 0
    for s in frame_shapes:
        lead = int(np.prod(s[:-2])) if len(s) > 2 else 1
        sub = _round_up(s[-2], 8) if len(s) >= 2 else 1
        lane = _round_up(s[-1], 128)
        total += lead * sub * lane * itemsize
    return total


def _pick_block(batch, frame_bytes, *, vmem_limit, min_steps=4, sublane_aligned=False):
    """Largest divisor of `batch` that (a) keeps the DOUBLE-BUFFERED in/out blocks
    within ~half the scoped VMEM (padded footprints) and (b) leaves >= min_steps grid
    steps (>= 2 per TensorCore on v7x's 2-TC chips).  With sublane_aligned=True the
    block count must be a multiple of 8 (or the full batch) so a 2-D (bt, L) block
    satisfies the (8, 128) tiling constraint."""
    budget = vmem_limit // 2
    fit = max(1, int(budget // max(1, 2 * frame_bytes)))        # x2: double buffering
    target = min(fit, max(1, batch // min(batch, min_steps)))
    cands = [d for d in range(1, batch + 1)
             if batch % d == 0 and (not sublane_aligned or d % 8 == 0 or d == batch)]
    ok = [d for d in cands if d <= target]
    return max(ok) if ok else min(cands)


def _space_to_depth(x, stride, pad, nbh, nbw):
    """(B, H, W, C) -> zero-pad, then (B, nbh, nbw, stride*stride*C)."""
    b, h, w, c = x.shape
    xp = jnp.pad(x, ((0, 0),
                     (pad, nbh * stride - h - pad),
                     (pad, nbw * stride - w - pad),
                     (0, 0)))
    z = xp.reshape(b, nbh, stride, nbw, stride, c)
    z = jnp.transpose(z, (0, 1, 3, 2, 4, 5))
    return z.reshape(b, nbh, nbw, stride * stride * c)


def _fold_conv_weight(w, stride):
    """Torch-layout (Cout, Cin, K, K) -> (4*stride^2*Cin, Cout) with shift-major order
    matching the in-kernel concat (di, dj) = (0,0),(0,1),(1,0),(1,1)."""
    w = np.asarray(w, np.float32)
    cout, cin, k, _ = w.shape
    assert k <= stride + 1, "shift decomposition assumes K <= stride + 1"
    out = np.zeros((2, 2, stride * stride * cin, cout), np.float32)
    for kh in range(k):
        di, a = divmod(kh, stride)
        for kw in range(k):
            dj, bb = divmod(kw, stride)
            p = a * stride + bb
            out[di, dj, p * cin:(p + 1) * cin, :] = w[:, :, kh, kw].T
    return jnp.asarray(out.reshape(4 * stride * stride * cin, cout))


def _conv_stage(x_bhwc, w_folded, bias, *, stride, ksize, pad, vmem_limit):
    b, h, w, _ = x_bhwc.shape
    kdim, cout = w_folded.shape
    cz = kdim // 4
    ho = (h + 2 * pad - ksize) // stride + 1
    wo = (w + 2 * pad - ksize) // stride + 1
    s_out = ho * wo

    z = _space_to_depth(x_bhwc, stride, pad, ho + 1, wo + 1).astype(MXU_INPUT_DTYPE)
    w_mxu = w_folded.astype(MXU_INPUT_DTYPE)
    zsize = jnp.dtype(MXU_INPUT_DTYPE).itemsize

    frame = (_frame_vmem_bytes((1, ho + 1, wo + 1, cz), itemsize=zsize)
             + _frame_vmem_bytes((1, s_out, cout)))
    bt = _pick_block(b, frame, vmem_limit=vmem_limit)
    nb = b // bt

    bias2 = bias.reshape(1, cout).astype(jnp.float32)
    flops = 2 * b * s_out * kdim * cout
    bytes_accessed = (z.size * zsize + kdim * cout * zsize
                      + (b * s_out * cout + nb * 2 * cout + cout) * 4)

    y_raw, mom = pl.pallas_call(
        conv_sd_kernel,
        grid=(nb,),
        in_specs=[
            pl.BlockSpec((bt, ho + 1, wo + 1, cz), lambda i: (i, 0, 0, 0)),
            pl.BlockSpec((kdim, cout), lambda i: (0, 0)),
            pl.BlockSpec((1, cout), lambda i: (0, 0)),
        ],
        out_specs=(
            pl.BlockSpec((bt, s_out, cout), lambda i: (i, 0, 0)),
            pl.BlockSpec((1, 2, cout), lambda i: (i, 0, 0)),
        ),
        out_shape=(
            jax.ShapeDtypeStruct((b, s_out, cout), jnp.float32),
            jax.ShapeDtypeStruct((nb, 2, cout), jnp.float32),
        ),
        compiler_params=pltpu.CompilerParams(
            dimension_semantics=("parallel",), vmem_limit_bytes=vmem_limit),
        cost_estimate=pl.CostEstimate(
            flops=flops, transcendentals=0, bytes_accessed=bytes_accessed),
    )(z, w_mxu, bias2)
    return y_raw, mom, ho, wo


def _bn_affine(mom, total_count, gamma, beta):
    """Combine per-block [sum, sum-sq-dev] moments (parallel-variance formula) into
    per-channel BN scale/shift.  Tiny (C,)-sized math, left to XLA."""
    nb = mom.shape[0]
    m_blk = total_count // nb
    s_b, m2_b = mom[:, 0, :], mom[:, 1, :]
    mean = jnp.sum(s_b, axis=0) / total_count
    mu_b = s_b / m_blk
    m2 = jnp.sum(m2_b, axis=0) + m_blk * jnp.sum((mu_b - mean[None, :]) ** 2, axis=0)
    var = jnp.maximum(m2 / total_count, 0.0)       # biased var, as in BN forward
    scale = gamma * jax.lax.rsqrt(var + EPS)
    shift = beta - mean * scale
    return scale.astype(jnp.float32), shift.astype(jnp.float32)


def _bn_relu_add(yc, ys, scale_c, shift_c, scale_s, shift_s, *, vmem_limit):
    b, lane = yc.shape
    frame = _frame_vmem_bytes((1, lane), (1, lane), (1, lane))
    bt = _pick_block(b, frame, vmem_limit=vmem_limit, sublane_aligned=True)
    nb = b // bt
    big = pl.BlockSpec((bt, lane), lambda i: (i, 0))
    vec = pl.BlockSpec((1, lane), lambda i: (0, 0))
    return pl.pallas_call(
        bn_relu_add_kernel,
        grid=(nb,),
        in_specs=[big, big, vec, vec, vec, vec],
        out_specs=big,
        out_shape=jax.ShapeDtypeStruct((b, lane), jnp.float32),
        compiler_params=pltpu.CompilerParams(
            dimension_semantics=("parallel",), vmem_limit_bytes=vmem_limit),
        cost_estimate=pl.CostEstimate(
            flops=7 * b * lane, transcendentals=0,
            bytes_accessed=3 * b * lane * 4 + 4 * lane * 4),
    )(yc, ys, scale_c, shift_c, scale_s, shift_s)


def resnet_forward(x, p):
    """x: (N, in_c, T, H, W) f32 -> (N, out_c, T, H//4, W//4) f32."""
    n, cin, t, h, w = x.shape
    b = n * t
    vmem_limit = _vmem_limit_bytes()

    # NCTHW -> (N*T, H, W, C): temporal kernel is 1, so frames are independent.
    x_bhwc = jnp.transpose(x, (0, 2, 3, 4, 1)).reshape(b, h, w, cin)
    # TODO(synk): x_bhwc is space-to-depth'd twice (stage-1 + skip); a shared padded
    # copy would save one HBM read of the input.

    # conv path, stage 1: 3x3 s2 conv (Pallas).  BN(batch stats)+ReLU is plain jnp so
    # XLA fuses it into the stage-2 space-to-depth pad/transpose (no extra HBM sweep).
    y1_raw, mom1, ho1, wo1 = _conv_stage(x_bhwc, p['w1'], p['b1'],
                                         stride=2, ksize=3, pad=1,
                                         vmem_limit=vmem_limit)
    mid_c = y1_raw.shape[-1]
    sc1, sh1 = _bn_affine(mom1, b * ho1 * wo1, p['g1'], p['be1'])
    y1 = jnp.maximum(y1_raw * sc1.reshape(1, 1, mid_c) + sh1.reshape(1, 1, mid_c), 0.0)
    y1_img = y1.reshape(b, ho1, wo1, mid_c)

    # conv path, stage 2
    y2_raw, mom2, ho2, wo2 = _conv_stage(y1_img, p['w2'], p['b2'],
                                         stride=2, ksize=3, pad=1,
                                         vmem_limit=vmem_limit)
    out_c = y2_raw.shape[-1]
    sc2, sh2 = _bn_affine(mom2, b * ho2 * wo2, p['g2'], p['be2'])

    # skip path: 5x5 s4 conv (its BN+ReLU is applied in the fused epilogue)
    ys_raw, moms, hos, wos = _conv_stage(x_bhwc, p['ws'], p['bs'],
                                         stride=4, ksize=5, pad=1,
                                         vmem_limit=vmem_limit)
    scs, shs = _bn_affine(moms, b * hos * wos, p['gs'], p['bes'])
    assert (ho2, wo2) == (hos, wos)

    # Fused lane-dense epilogue: BN+ReLU on both branches + residual add.
    s_out = ho2 * wo2
    lane = s_out * out_c                                     # channel-fastest flatten
    tile = lambda v: jnp.tile(v, s_out).reshape(1, lane)     # period out_c along lanes
    out_flat = _bn_relu_add(y2_raw.reshape(b, lane), ys_raw.reshape(b, lane),
                            tile(sc2), tile(sh2), tile(scs), tile(shs),
                            vmem_limit=vmem_limit)           # (B, s_out*out_c)

    out = out_flat.reshape(n, t, ho2, wo2, out_c)
    return jnp.transpose(out, (0, 4, 1, 2, 3))


def prepare_params(raw):
    f32 = lambda a: jnp.asarray(a, jnp.float32)
    return dict(
        w1=_fold_conv_weight(raw['w1'], 2), b1=f32(raw['b1']),
        g1=f32(raw['g1']), be1=f32(raw['be1']),
        w2=_fold_conv_weight(raw['w2'], 2), b2=f32(raw['b2']),
        g2=f32(raw['g2']), be2=f32(raw['be2']),
        ws=_fold_conv_weight(raw['ws'], 4), bs=f32(raw['bs']),
        gs=f32(raw['gs']), bes=f32(raw['bes']),
    )


# ---------------------------------------------------------------------------
# Numpy reference (float64) matching the PyTorch module semantics
# ---------------------------------------------------------------------------

def _conv2d_ref(x, w, b, stride, pad):
    bsz, cin, h, ww = x.shape
    cout, _, k, _ = w.shape
    ho = (h + 2 * pad - k) // stride + 1
    wo = (ww + 2 * pad - k) // stride + 1
    xp = np.zeros((bsz, cin, h + 2 * pad, ww + 2 * pad), x.dtype)
    xp[:, :, pad:pad + h, pad:pad + ww] = x
    y = np.zeros((bsz, cout, ho, wo), x.dtype)
    for kh in range(k):
        for kw in range(k):
            xs = xp[:, :, kh:kh + stride * ho:stride, kw:kw + stride * wo:stride]
            y += np.einsum('bchw,oc->bohw', xs, w[:, :, kh, kw])
    return y + b[None, :, None, None]


def resnet_ref_numpy(x, raw):
    x = np.asarray(x, np.float64)

    def conv3d(x5, w, b, stride, pad):
        n, c, t, h, ww = x5.shape
        xf = np.transpose(x5, (0, 2, 1, 3, 4)).reshape(n * t, c, h, ww)
        yf = _conv2d_ref(xf, np.asarray(w, np.float64), np.asarray(b, np.float64),
                         stride, pad)
        co, ho, wo = yf.shape[1:]
        return np.transpose(yf.reshape(n, t, co, ho, wo), (0, 2, 1, 3, 4))

    def bn_relu(y, gamma, beta):
        gamma = np.asarray(gamma, np.float64).reshape(1, -1, 1, 1, 1)
        beta = np.asarray(beta, np.float64).reshape(1, -1, 1, 1, 1)
        mean = y.mean(axis=(0, 2, 3, 4), keepdims=True)
        var = y.var(axis=(0, 2, 3, 4), keepdims=True)     # biased, as in BN forward
        return np.maximum((y - mean) / np.sqrt(var + EPS) * gamma + beta, 0.0)

    h1 = bn_relu(conv3d(x, raw['w1'], raw['b1'], 2, 1), raw['g1'], raw['be1'])
    h2 = bn_relu(conv3d(h1, raw['w2'], raw['b2'], 2, 1), raw['g2'], raw['be2'])
    sk = bn_relu(conv3d(x, raw['ws'], raw['bs'], 4, 1), raw['gs'], raw['bes'])
    return (h2 + sk).astype(np.float32)


# ---------------------------------------------------------------------------

if __name__ == "__main__":
    N, in_c, mid_c, out_c = 2, 4, 8, 16
    T, H, W = 4, 16, 16

    key = jax.random.PRNGKey(0)
    ks = jax.random.split(key, 13)
    x = jax.random.normal(ks[0], (N, in_c, T, H, W), dtype=jnp.float32)

    def rnd(k, shape, scale):
        return (scale * jax.random.normal(k, shape, dtype=jnp.float32)).astype(jnp.float32)

    raw = dict(
        w1=rnd(ks[1], (mid_c, in_c, 3, 3), 0.2), b1=rnd(ks[2], (mid_c,), 0.1),
        g1=1.0 + rnd(ks[3], (mid_c,), 0.1), be1=rnd(ks[4], (mid_c,), 0.05),
        w2=rnd(ks[5], (out_c, mid_c, 3, 3), 0.2), b2=rnd(ks[6], (out_c,), 0.1),
        g2=1.0 + rnd(ks[7], (out_c,), 0.1), be2=rnd(ks[8], (out_c,), 0.05),
        ws=rnd(ks[9], (out_c, in_c, 5, 5), 0.2), bs=rnd(ks[10], (out_c,), 0.1),
        gs=1.0 + rnd(ks[11], (out_c,), 0.1), bes=rnd(ks[12], (out_c,), 0.05),
    )
    params = prepare_params(raw)

    fwd = jax.jit(resnet_forward)
    out = jax.block_until_ready(fwd(x, params))
    assert out.shape == (N, out_c, T, H // 4, W // 4), out.shape

    ref = resnet_ref_numpy(np.asarray(x), {k: np.asarray(v) for k, v in raw.items()})
    np.testing.assert_allclose(np.asarray(out), ref, rtol=2e-3, atol=2e-3)

    print("KERNEL_OK")
</pallas_src>

<mosaic_0001>
module attributes {stable_mosaic.version = 11 : i64} {
  func.func @conv_sd_kernel(%arg0: i32, %arg1: memref<2x9x9x16xf32, #tpu.memory_space<vmem>>, %arg2: memref<64x8xf32, #tpu.memory_space<vmem>>, %arg3: memref<1x8xf32, #tpu.memory_space<vmem>>, %arg4: memref<2x64x8xf32, #tpu.memory_space<vmem>>, %arg5: memref<1x2x8xf32, #tpu.memory_space<vmem>>) attributes {dimension_semantics = [#tpu.dimension_semantics<parallel>], iteration_bounds = array<i64: 4>, scalar_prefetch = 0 : i64, scratch_operands = 0 : i64, tpu.core_type = #tpu.core_type<tc>, window_params = [{transform_indices = @transform_0, window_bounds = array<i64: 2, 9, 9, 16>}, {pipeline_mode = #tpu.pipeline_mode<synchronous>, transform_indices = @transform_1, window_bounds = array<i64: 64, 8>}, {pipeline_mode = #tpu.pipeline_mode<synchronous>, transform_indices = @transform_2, window_bounds = array<i64: 1, 8>}, {transform_indices = @transform_3, window_bounds = array<i64: 2, 64, 8>}, {transform_indices = @transform_4, window_bounds = array<i64: 1, 2, 8>}]} {
    %c0 = arith.constant 0 : index
    %c0_0 = arith.constant 0 : index
    %c0_1 = arith.constant 0 : index
    %c0_2 = arith.constant 0 : index
    %0 = vector.load %arg1[%c0, %c0_0, %c0_1, %c0_2] : memref<2x9x9x16xf32, #tpu.memory_space<vmem>>, vector<2x8x8x16xf32>
    %1 = vector.shape_cast %0 : vector<2x8x8x16xf32> to vector<128x16xf32>
    %c0_3 = arith.constant 0 : index
    %c0_4 = arith.constant 0 : index
    %c1 = arith.constant 1 : index
    %c0_5 = arith.constant 0 : index
    %2 = vector.load %arg1[%c0_3, %c0_4, %c1, %c0_5] : memref<2x9x9x16xf32, #tpu.memory_space<vmem>>, vector<2x8x8x16xf32>
    %3 = vector.shape_cast %2 : vector<2x8x8x16xf32> to vector<128x16xf32>
    %c0_6 = arith.constant 0 : index
    %c1_7 = arith.constant 1 : index
    %c0_8 = arith.constant 0 : index
    %c0_9 = arith.constant 0 : index
    %4 = vector.load %arg1[%c0_6, %c1_7, %c0_8, %c0_9] : memref<2x9x9x16xf32, #tpu.memory_space<vmem>>, vector<2x8x8x16xf32>
    %5 = vector.shape_cast %4 : vector<2x8x8x16xf32> to vector<128x16xf32>
    %c0_10 = arith.constant 0 : index
    %c1_11 = arith.constant 1 : index
    %c1_12 = arith.constant 1 : index
    %c0_13 = arith.constant 0 : index
    %6 = vector.load %arg1[%c0_10, %c1_11, %c1_12, %c0_13] : memref<2x9x9x16xf32, #tpu.memory_space<vmem>>, vector<2x8x8x16xf32>
    %7 = vector.shape_cast %6 : vector<2x8x8x16xf32> to vector<128x16xf32>
    %8 = tpu.concatenate %1, %3, %5, %7 in 1 : vector<128x16xf32>, vector<128x16xf32>, vector<128x16xf32>, vector<128x16xf32> -> vector<128x64xf32>
    %c0_14 = arith.constant 0 : index
    %c0_15 = arith.constant 0 : index
    %9 = vector.load %arg2[%c0_14, %c0_15] : memref<64x8xf32, #tpu.memory_space<vmem>>, vector<64x8xf32>
    %cst = arith.constant dense<0.000000e+00> : vector<128x8xf32>
    %10 = tpu.matmul %8, %9, %cst {dimension_numbers = #tpu.dot_dimension_numbers<[1], [0], [0], [1], [0, 0, 1, 1], [], []>} : vector<128x64xf32>, vector<64x8xf32>, vector<128x8xf32> -> vector<128x8xf32>
    %c0_16 = arith.constant 0 : index
    %c0_17 = arith.constant 0 : index
    %11 = vector.load %arg3[%c0_16, %c0_17] : memref<1x8xf32, #tpu.memory_space<vmem>>, vector<1x8xf32>
    %12 = vector.broadcast %11 : vector<1x8xf32> to vector<128x8xf32>
    %13 = arith.addf %10, %12 : vector<128x8xf32>
    %14 = vector.shape_cast %13 : vector<128x8xf32> to vector<2x64x8xf32>
    %c0_18 = arith.constant 0 : index
    %c0_19 = arith.constant 0 : index
    %c0_20 = arith.constant 0 : index
    %15 = vector.load %arg4[%c0_18, %c0_19, %c0_20] : memref<2x64x8xf32, #tpu.memory_space<vmem>>, vector<2x64x8xf32>
    tpu.vector_store %arg4[%c0_18, %c0_19, %c0_20], %14 {strides = array<i32>} : memref<2x64x8xf32, #tpu.memory_space<vmem>>, vector<2x64x8xf32>,
    %cst_21 = arith.constant dense<0.000000e+00> : vector<8xf32>
    %16 = vector.multi_reduction <add>, %13, %cst_21 [0] : vector<128x8xf32> to vector<8xf32>
    %17 = vector.shape_cast %16 : vector<8xf32> to vector<1x8xf32>
    %cst_22 = arith.constant 7.812500e-03 : f32
    %18 = vector.broadcast %cst_22 : f32 to vector<1x8xf32>
    %19 = arith.mulf %17, %18 : vector<1x8xf32>
    %20 = vector.broadcast %19 : vector<1x8xf32> to vector<128x8xf32>
    %21 = arith.subf %13, %20 : vector<128x8xf32>
    %22 = arith.mulf %21, %21 : vector<128x8xf32>
    %cst_23 = arith.constant dense<0.000000e+00> : vector<8xf32>
    %23 = vector.multi_reduction <add>, %22, %cst_23 [0] : vector<128x8xf32> to vector<8xf32>
    %24 = vector.shape_cast %23 : vector<8xf32> to vector<1x8xf32>
    %25 = tpu.concatenate %17, %24 in 0 : vector<1x8xf32>, vector<1x8xf32> -> vector<2x8xf32>
    %26 = vector.shape_cast %25 : vector<2x8xf32> to vector<1x2x8xf32>
    %c0_24 = arith.constant 0 : index
    %c0_25 = arith.constant 0 : index
    %c0_26 = arith.constant 0 : index
    %27 = vector.load %arg5[%c0_24, %c0_25, %c0_26] : memref<1x2x8xf32, #tpu.memory_space<vmem>>, vector<1x2x8xf32>
    tpu.vector_store %arg5[%c0_24, %c0_25, %c0_26], %26 {strides = array<i32>} : memref<1x2x8xf32, #tpu.memory_space<vmem>>, vector<1x2x8xf32>,
    return
  }
  func.func @transform_0(%arg0: i32) -> (i32, i32, i32, i32) {
    %c0_i32 = arith.constant 0 : i32
    %c0_i32_0 = arith.constant 0 : i32
    %c0_i32_1 = arith.constant 0 : i32
    %c0_i32_2 = arith.constant 0 : i32
    return %arg0, %c0_i32, %c0_i32_0, %c0_i32_1 : i32, i32, i32, i32
  }
  func.func @transform_1(%arg0: i32) -> (i32, i32) {
    %c0_i32 = arith.constant 0 : i32
    %c0_i32_0 = arith.constant 0 : i32
    %c0_i32_1 = arith.constant 0 : i32
    return %c0_i32, %c0_i32_0 : i32, i32
  }
  func.func @transform_2(%arg0: i32) -> (i32, i32) {
    %c0_i32 = arith.constant 0 : i32
    %c0_i32_0 = arith.constant 0 : i32
    %c0_i32_1 = arith.constant 0 : i32
    return %c0_i32, %c0_i32_0 : i32, i32
  }
  func.func @transform_3(%arg0: i32) -> (i32, i32, i32) {
    %c0_i32 = arith.constant 0 : i32
    %c0_i32_0 = arith.constant 0 : i32
    %c0_i32_1 = arith.constant 0 : i32
    return %arg0, %c0_i32, %c0_i32_0 : i32, i32, i32
  }
  func.func @transform_4(%arg0: i32) -> (i32, i32, i32) {
    %c0_i32 = arith.constant 0 : i32
    %c0_i32_0 = arith.constant 0 : i32
    %c0_i32_1 = arith.constant 0 : i32
    return %arg0, %c0_i32, %c0_i32_0 : i32, i32, i32
  }
}

module attributes {stable_mosaic.version = 11 : i64} {
  func.func @conv_sd_kernel(%arg0: i32, %arg1: memref<2x5x5x32xf32, #tpu.memory_space<vmem>>, %arg2: memref<128x16xf32, #tpu.memory_space<vmem>>, %arg3: memref<1x16xf32, #tpu.memory_space<vmem>>, %arg4: memref<2x16x16xf32, #tpu.memory_space<vmem>>, %arg5: memref<1x2x16xf32, #tpu.memory_space<vmem>>) attributes {dimension_semantics = [#tpu.dimension_semantics<parallel>], iteration_bounds = array<i64: 4>, scalar_prefetch = 0 : i64, scratch_operands = 0 : i64, tpu.core_type = #tpu.core_type<tc>, window_params = [{transform_indices = @transform_0, window_bounds = array<i64: 2, 5, 5, 32>}, {pipeline_mode = #tpu.pipeline_mode<synchronous>, transform_indices = @transform_1, window_bounds = array<i64: 128, 16>}, {pipeline_mode = #tpu.pipeline_mode<synchronous>, transform_indices = @transform_2, window_bounds = array<i64: 1, 16>}, {transform_indices = @transform_3, window_bounds = array<i64: 2, 16, 16>}, {transform_indices = @transform_4, window_bounds = array<i64: 1, 2, 16>}]} {
    %c0 = arith.constant 0 : index
    %c0_0 = arith.constant 0 : index
    %c0_1 = arith.constant 0 : index
    %c0_2 = arith.constant 0 : index
    %0 = vector.load %arg1[%c0, %c0_0, %c0_1, %c0_2] : memref<2x5x5x32xf32, #tpu.memory_space<vmem>>, vector<2x4x4x32xf32>
    %1 = vector.shape_cast %0 : vector<2x4x4x32xf32> to vector<32x32xf32>
    %c0_3 = arith.constant 0 : index
    %c0_4 = arith.constant 0 : index
    %c1 = arith.constant 1 : index
    %c0_5 = arith.constant 0 : index
    %2 = vector.load %arg1[%c0_3, %c0_4, %c1, %c0_5] : memref<2x5x5x32xf32, #tpu.memory_space<vmem>>, vector<2x4x4x32xf32>
    %3 = vector.shape_cast %2 : vector<2x4x4x32xf32> to vector<32x32xf32>
    %c0_6 = arith.constant 0 : index
    %c1_7 = arith.constant 1 : index
    %c0_8 = arith.constant 0 : index
    %c0_9 = arith.constant 0 : index
    %4 = vector.load %arg1[%c0_6, %c1_7, %c0_8, %c0_9] : memref<2x5x5x32xf32, #tpu.memory_space<vmem>>, vector<2x4x4x32xf32>
    %5 = vector.shape_cast %4 : vector<2x4x4x32xf32> to vector<32x32xf32>
    %c0_10 = arith.constant 0 : index
    %c1_11 = arith.constant 1 : index
    %c1_12 = arith.constant 1 : index
    %c0_13 = arith.constant 0 : index
    %6 = vector.load %arg1[%c0_10, %c1_11, %c1_12, %c0_13] : memref<2x5x5x32xf32, #tpu.memory_space<vmem>>, vector<2x4x4x32xf32>
    %7 = vector.shape_cast %6 : vector<2x4x4x32xf32> to vector<32x32xf32>
    %8 = tpu.concatenate %1, %3, %5, %7 in 1 : vector<32x32xf32>, vector<32x32xf32>, vector<32x32xf32>, vector<32x32xf32> -> vector<32x128xf32>
    %c0_14 = arith.constant 0 : index
    %c0_15 = arith.constant 0 : index
    %9 = vector.load %arg2[%c0_14, %c0_15] : memref<128x16xf32, #tpu.memory_space<vmem>>, vector<128x16xf32>
    %cst = arith.constant dense<0.000000e+00> : vector<32x16xf32>
    %10 = tpu.matmul %8, %9, %cst {dimension_numbers = #tpu.dot_dimension_numbers<[1], [0], [0], [1], [0, 0, 1, 1], [], []>} : vector<32x128xf32>, vector<128x16xf32>, vector<32x16xf32> -> vector<32x16xf32>
    %c0_16 = arith.constant 0 : index
    %c0_17 = arith.constant 0 : index
    %11 = vector.load %arg3[%c0_16, %c0_17] : memref<1x16xf32, #tpu.memory_space<vmem>>, vector<1x16xf32>
    %12 = vector.broadcast %11 : vector<1x16xf32> to vector<32x16xf32>
    %13 = arith.addf %10, %12 : vector<32x16xf32>
    %14 = vector.shape_cast %13 : vector<32x16xf32> to vector<2x16x16xf32>
    %c0_18 = arith.constant 0 : index
    %c0_19 = arith.constant 0 : index
    %c0_20 = arith.constant 0 : index
    %15 = vector.load %arg4[%c0_18, %c0_19, %c0_20] : memref<2x16x16xf32, #tpu.memory_space<vmem>>, vector<2x16x16xf32>
    tpu.vector_store %arg4[%c0_18, %c0_19, %c0_20], %14 {strides = array<i32>} : memref<2x16x16xf32, #tpu.memory_space<vmem>>, vector<2x16x16xf32>,
    %cst_21 = arith.constant dense<0.000000e+00> : vector<16xf32>
    %16 = vector.multi_reduction <add>, %13, %cst_21 [0] : vector<32x16xf32> to vector<16xf32>
    %17 = vector.shape_cast %16 : vector<16xf32> to vector<1x16xf32>
    %cst_22 = arith.constant 3.125000e-02 : f32
    %18 = vector.broadcast %cst_22 : f32 to vector<1x16xf32>
    %19 = arith.mulf %17, %18 : vector<1x16xf32>
    %20 = vector.broadcast %19 : vector<1x16xf32> to vector<32x16xf32>
    %21 = arith.subf %13, %20 : vector<32x16xf32>
    %22 = arith.mulf %21, %21 : vector<32x16xf32>
    %cst_23 = arith.constant dense<0.000000e+00> : vector<16xf32>
    %23 = vector.multi_reduction <add>, %22, %cst_23 [0] : vector<32x16xf32> to vector<16xf32>
    %24 = vector.shape_cast %23 : vector<16xf32> to vector<1x16xf32>
    %25 = tpu.concatenate %17, %24 in 0 : vector<1x16xf32>, vector<1x16xf32> -> vector<2x16xf32>
    %26 = vector.shape_cast %25 : vector<2x16xf32> to vector<1x2x16xf32>
    %c0_24 = arith.constant 0 : index
    %c0_25 = arith.constant 0 : index
    %c0_26 = arith.constant 0 : index
    %27 = vector.load %arg5[%c0_24, %c0_25, %c0_26] : memref<1x2x16xf32, #tpu.memory_space<vmem>>, vector<1x2x16xf32>
    tpu.vector_store %arg5[%c0_24, %c0_25, %c0_26], %26 {strides = array<i32>} : memref<1x2x16xf32, #tpu.memory_space<vmem>>, vector<1x2x16xf32>,
    return
  }
  func.func @transform_0(%arg0: i32) -> (i32, i32, i32, i32) {
    %c0_i32 = arith.constant 0 : i32
    %c0_i32_0 = arith.constant 0 : i32
    %c0_i32_1 = arith.constant 0 : i32
    %c0_i32_2 = arith.constant 0 : i32
    return %arg0, %c0_i32, %c0_i32_0, %c0_i32_1 : i32, i32, i32, i32
  }
  func.func @transform_1(%arg0: i32) -> (i32, i32) {
    %c0_i32 = arith.constant 0 : i32
    %c0_i32_0 = arith.constant 0 : i32
    %c0_i32_1 = arith.constant 0 : i32
    return %c0_i32, %c0_i32_0 : i32, i32
  }
  func.func @transform_2(%arg0: i32) -> (i32, i32) {
    %c0_i32 = arith.constant 0 : i32
    %c0_i32_0 = arith.constant 0 : i32
    %c0_i32_1 = arith.constant 0 : i32
    return %c0_i32, %c0_i32_0 : i32, i32
  }
  func.func @transform_3(%arg0: i32) -> (i32, i32, i32) {
    %c0_i32 = arith.constant 0 : i32
    %c0_i32_0 = arith.constant 0 : i32
    %c0_i32_1 = arith.constant 0 : i32
    return %arg0, %c0_i32, %c0_i32_0 : i32, i32, i32
  }
  func.func @transform_4(%arg0: i32) -> (i32, i32, i32) {
    %c0_i32 = arith.constant 0 : i32
    %c0_i32_0 = arith.constant 0 : i32
    %c0_i32_1 = arith.constant 0 : i32
    return %arg0, %c0_i32, %c0_i32_0 : i32, i32, i32
  }
}

module attributes {stable_mosaic.version = 11 : i64} {
  func.func @conv_sd_kernel(%arg0: i32, %arg1: memref<2x5x5x64xf32, #tpu.memory_space<vmem>>, %arg2: memref<256x16xf32, #tpu.memory_space<vmem>>, %arg3: memref<1x16xf32, #tpu.memory_space<vmem>>, %arg4: memref<2x16x16xf32, #tpu.memory_space<vmem>>, %arg5: memref<1x2x16xf32, #tpu.memory_space<vmem>>) attributes {dimension_semantics = [#tpu.dimension_semantics<parallel>], iteration_bounds = array<i64: 4>, scalar_prefetch = 0 : i64, scratch_operands = 0 : i64, tpu.core_type = #tpu.core_type<tc>, window_params = [{transform_indices = @transform_0, window_bounds = array<i64: 2, 5, 5, 64>}, {pipeline_mode = #tpu.pipeline_mode<synchronous>, transform_indices = @transform_1, window_bounds = array<i64: 256, 16>}, {pipeline_mode = #tpu.pipeline_mode<synchronous>, transform_indices = @transform_2, window_bounds = array<i64: 1, 16>}, {transform_indices = @transform_3, window_bounds = array<i64: 2, 16, 16>}, {transform_indices = @transform_4, window_bounds = array<i64: 1, 2, 16>}]} {
    %c0 = arith.constant 0 : index
    %c0_0 = arith.constant 0 : index
    %c0_1 = arith.constant 0 : index
    %c0_2 = arith.constant 0 : index
    %0 = vector.load %arg1[%c0, %c0_0, %c0_1, %c0_2] : memref<2x5x5x64xf32, #tpu.memory_space<vmem>>, vector<2x4x4x64xf32>
    %1 = vector.shape_cast %0 : vector<2x4x4x64xf32> to vector<32x64xf32>
    %c0_3 = arith.constant 0 : index
    %c0_4 = arith.constant 0 : index
    %c1 = arith.constant 1 : index
    %c0_5 = arith.constant 0 : index
    %2 = vector.load %arg1[%c0_3, %c0_4, %c1, %c0_5] : memref<2x5x5x64xf32, #tpu.memory_space<vmem>>, vector<2x4x4x64xf32>
    %3 = vector.shape_cast %2 : vector<2x4x4x64xf32> to vector<32x64xf32>
    %c0_6 = arith.constant 0 : index
    %c1_7 = arith.constant 1 : index
    %c0_8 = arith.constant 0 : index
    %c0_9 = arith.constant 0 : index
    %4 = vector.load %arg1[%c0_6, %c1_7, %c0_8, %c0_9] : memref<2x5x5x64xf32, #tpu.memory_space<vmem>>, vector<2x4x4x64xf32>
    %5 = vector.shape_cast %4 : vector<2x4x4x64xf32> to vector<32x64xf32>
    %c0_10 = arith.constant 0 : index
    %c1_11 = arith.constant 1 : index
    %c1_12 = arith.constant 1 : index
    %c0_13 = arith.constant 0 : index
    %6 = vector.load %arg1[%c0_10, %c1_11, %c1_12, %c0_13] : memref<2x5x5x64xf32, #tpu.memory_space<vmem>>, vector<2x4x4x64xf32>
    %7 = vector.shape_cast %6 : vector<2x4x4x64xf32> to vector<32x64xf32>
    %8 = tpu.concatenate %1, %3, %5, %7 in 1 : vector<32x64xf32>, vector<32x64xf32>, vector<32x64xf32>, vector<32x64xf32> -> vector<32x256xf32>
    %c0_14 = arith.constant 0 : index
    %c0_15 = arith.constant 0 : index
    %9 = vector.load %arg2[%c0_14, %c0_15] : memref<256x16xf32, #tpu.memory_space<vmem>>, vector<256x16xf32>
    %cst = arith.constant dense<0.000000e+00> : vector<32x16xf32>
    %10 = tpu.matmul %8, %9, %cst {dimension_numbers = #tpu.dot_dimension_numbers<[1], [0], [0], [1], [0, 0, 1, 1], [], []>} : vector<32x256xf32>, vector<256x16xf32>, vector<32x16xf32> -> vector<32x16xf32>
    %c0_16 = arith.constant 0 : index
    %c0_17 = arith.constant 0 : index
    %11 = vector.load %arg3[%c0_16, %c0_17] : memref<1x16xf32, #tpu.memory_space<vmem>>, vector<1x16xf32>
    %12 = vector.broadcast %11 : vector<1x16xf32> to vector<32x16xf32>
    %13 = arith.addf %10, %12 : vector<32x16xf32>
    %14 = vector.shape_cast %13 : vector<32x16xf32> to vector<2x16x16xf32>
    %c0_18 = arith.constant 0 : index
    %c0_19 = arith.constant 0 : index
    %c0_20 = arith.constant 0 : index
    %15 = vector.load %arg4[%c0_18, %c0_19, %c0_20] : memref<2x16x16xf32, #tpu.memory_space<vmem>>, vector<2x16x16xf32>
    tpu.vector_store %arg4[%c0_18, %c0_19, %c0_20], %14 {strides = array<i32>} : memref<2x16x16xf32, #tpu.memory_space<vmem>>, vector<2x16x16xf32>,
    %cst_21 = arith.constant dense<0.000000e+00> : vector<16xf32>
    %16 = vector.multi_reduction <add>, %13, %cst_21 [0] : vector<32x16xf32> to vector<16xf32>
    %17 = vector.shape_cast %16 : vector<16xf32> to vector<1x16xf32>
    %cst_22 = arith.constant 3.125000e-02 : f32
    %18 = vector.broadcast %cst_22 : f32 to vector<1x16xf32>
    %19 = arith.mulf %17, %18 : vector<1x16xf32>
    %20 = vector.broadcast %19 : vector<1x16xf32> to vector<32x16xf32>
    %21 = arith.subf %13, %20 : vector<32x16xf32>
    %22 = arith.mulf %21, %21 : vector<32x16xf32>
    %cst_23 = arith.constant dense<0.000000e+00> : vector<16xf32>
    %23 = vector.multi_reduction <add>, %22, %cst_23 [0] : vector<32x16xf32> to vector<16xf32>
    %24 = vector.shape_cast %23 : vector<16xf32> to vector<1x16xf32>
    %25 = tpu.concatenate %17, %24 in 0 : vector<1x16xf32>, vector<1x16xf32> -> vector<2x16xf32>
    %26 = vector.shape_cast %25 : vector<2x16xf32> to vector<1x2x16xf32>
    %c0_24 = arith.constant 0 : index
    %c0_25 = arith.constant 0 : index
    %c0_26 = arith.constant 0 : index
    %27 = vector.load %arg5[%c0_24, %c0_25, %c0_26] : memref<1x2x16xf32, #tpu.memory_space<vmem>>, vector<1x2x16xf32>
    tpu.vector_store %arg5[%c0_24, %c0_25, %c0_26], %26 {strides = array<i32>} : memref<1x2x16xf32, #tpu.memory_space<vmem>>, vector<1x2x16xf32>,
    return
  }
  func.func @transform_0(%arg0: i32) -> (i32, i32, i32, i32) {
    %c0_i32 = arith.constant 0 : i32
    %c0_i32_0 = arith.constant 0 : i32
    %c0_i32_1 = arith.constant 0 : i32
    %c0_i32_2 = arith.constant 0 : i32
    return %arg0, %c0_i32, %c0_i32_0, %c0_i32_1 : i32, i32, i32, i32
  }
  func.func @transform_1(%arg0: i32) -> (i32, i32) {
    %c0_i32 = arith.constant 0 : i32
    %c0_i32_0 = arith.constant 0 : i32
    %c0_i32_1 = arith.constant 0 : i32
    return %c0_i32, %c0_i32_0 : i32, i32
  }
  func.func @transform_2(%arg0: i32) -> (i32, i32) {
    %c0_i32 = arith.constant 0 : i32
    %c0_i32_0 = arith.constant 0 : i32
    %c0_i32_1 = arith.constant 0 : i32
    return %c0_i32, %c0_i32_0 : i32, i32
  }
  func.func @transform_3(%arg0: i32) -> (i32, i32, i32) {
    %c0_i32 = arith.constant 0 : i32
    %c0_i32_0 = arith.constant 0 : i32
    %c0_i32_1 = arith.constant 0 : i32
    return %arg0, %c0_i32, %c0_i32_0 : i32, i32, i32
  }
  func.func @transform_4(%arg0: i32) -> (i32, i32, i32) {
    %c0_i32 = arith.constant 0 : i32
    %c0_i32_0 = arith.constant 0 : i32
    %c0_i32_1 = arith.constant 0 : i32
    return %arg0, %c0_i32, %c0_i32_0 : i32, i32, i32
  }
}

module attributes {stable_mosaic.version = 11 : i64} {
  func.func @bn_relu_add_kernel(%arg0: i32, %arg1: memref<8x256xf32, #tpu.memory_space<vmem>>, %arg2: memref<8x256xf32, #tpu.memory_space<vmem>>, %arg3: memref<1x256xf32, #tpu.memory_space<vmem>>, %arg4: memref<1x256xf32, #tpu.memory_space<vmem>>, %arg5: memref<1x256xf32, #tpu.memory_space<vmem>>, %arg6: memref<1x256xf32, #tpu.memory_space<vmem>>, %arg7: memref<8x256xf32, #tpu.memory_space<vmem>>) attributes {dimension_semantics = [#tpu.dimension_semantics<parallel>], iteration_bounds = array<i64: 1>, scalar_prefetch = 0 : i64, scratch_operands = 0 : i64, tpu.core_type = #tpu.core_type<tc>, window_params = [{transform_indices = @transform_0, window_bounds = array<i64: 8, 256>}, {transform_indices = @transform_1, window_bounds = array<i64: 8, 256>}, {pipeline_mode = #tpu.pipeline_mode<synchronous>, transform_indices = @transform_2, window_bounds = array<i64: 1, 256>}, {pipeline_mode = #tpu.pipeline_mode<synchronous>, transform_indices = @transform_3, window_bounds = array<i64: 1, 256>}, {pipeline_mode = #tpu.pipeline_mode<synchronous>, transform_indices = @transform_4, window_bounds = array<i64: 1, 256>}, {pipeline_mode = #tpu.pipeline_mode<synchronous>, transform_indices = @transform_5, window_bounds = array<i64: 1, 256>}, {transform_indices = @transform_6, window_bounds = array<i64: 8, 256>}]} {
    %c0 = arith.constant 0 : index
    %c0_0 = arith.constant 0 : index
    %0 = vector.load %arg1[%c0, %c0_0] : memref<8x256xf32, #tpu.memory_space<vmem>>, vector<8x256xf32>
    %c0_1 = arith.constant 0 : index
    %c0_2 = arith.constant 0 : index
    %1 = vector.load %arg3[%c0_1, %c0_2] : memref<1x256xf32, #tpu.memory_space<vmem>>, vector<1x256xf32>
    %2 = vector.broadcast %1 : vector<1x256xf32> to vector<8x256xf32>
    %3 = arith.mulf %0, %2 : vector<8x256xf32>
    %c0_3 = arith.constant 0 : index
    %c0_4 = arith.constant 0 : index
    %4 = vector.load %arg4[%c0_3, %c0_4] : memref<1x256xf32, #tpu.memory_space<vmem>>, vector<1x256xf32>
    %5 = vector.broadcast %4 : vector<1x256xf32> to vector<8x256xf32>
    %6 = arith.addf %3, %5 : vector<8x256xf32>
    %cst = arith.constant 0.000000e+00 : f32
    %7 = vector.broadcast %cst : f32 to vector<8x256xf32>
    %8 = arith.maximumf %6, %7 : vector<8x256xf32>
    %c0_5 = arith.constant 0 : index
    %c0_6 = arith.constant 0 : index
    %9 = vector.load %arg2[%c0_5, %c0_6] : memref<8x256xf32, #tpu.memory_space<vmem>>, vector<8x256xf32>
    %c0_7 = arith.constant 0 : index
    %c0_8 = arith.constant 0 : index
    %10 = vector.load %arg5[%c0_7, %c0_8] : memref<1x256xf32, #tpu.memory_space<vmem>>, vector<1x256xf32>
    %11 = vector.broadcast %10 : vector<1x256xf32> to vector<8x256xf32>
    %12 = arith.mulf %9, %11 : vector<8x256xf32>
    %c0_9 = arith.constant 0 : index
    %c0_10 = arith.constant 0 : index
    %13 = vector.load %arg6[%c0_9, %c0_10] : memref<1x256xf32, #tpu.memory_space<vmem>>, vector<1x256xf32>
    %14 = vector.broadcast %13 : vector<1x256xf32> to vector<8x256xf32>
    %15 = arith.addf %12, %14 : vector<8x256xf32>
    %cst_11 = arith.constant 0.000000e+00 : f32
    %16 = vector.broadcast %cst_11 : f32 to vector<8x256xf32>
    %17 = arith.maximumf %15, %16 : vector<8x256xf32>
    %18 = arith.addf %8, %17 : vector<8x256xf32>
    %c0_12 = arith.constant 0 : index
    %c0_13 = arith.constant 0 : index
    %19 = vector.load %arg7[%c0_12, %c0_13] : memref<8x256xf32, #tpu.memory_space<vmem>>, vector<8x256xf32>
    tpu.vector_store %arg7[%c0_12, %c0_13], %18 {strides = array<i32>} : memref<8x256xf32, #tpu.memory_space<vmem>>, vector<8x256xf32>,
    return
  }
  func.func @transform_0(%arg0: i32) -> (i32, i32) {
    %c0_i32 = arith.constant 0 : i32
    %c0_i32_0 = arith.constant 0 : i32
    return %arg0, %c0_i32 : i32, i32
  }
  func.func @transform_1(%arg0: i32) -> (i32, i32) {
    %c0_i32 = arith.constant 0 : i32
    %c0_i32_0 = arith.constant 0 : i32
    return %arg0, %c0_i32 : i32, i32
  }
  func.func @transform_2(%arg0: i32) -> (i32, i32) {
    %c0_i32 = arith.constant 0 : i32
    %c0_i32_0 = arith.constant 0 : i32
    %c0_i32_1 = arith.constant 0 : i32
    return %c0_i32, %c0_i32_0 : i32, i32
  }
  func.func @transform_3(%arg0: i32) -> (i32, i32) {
    %c0_i32 = arith.constant 0 : i32
    %c0_i32_0 = arith.constant 0 : i32
    %c0_i32_1 = arith.constant 0 : i32
    return %c0_i32, %c0_i32_0 : i32, i32
  }
  func.func @transform_4(%arg0: i32) -> (i32, i32) {
    %c0_i32 = arith.constant 0 : i32
    %c0_i32_0 = arith.constant 0 : i32
    %c0_i32_1 = arith.constant 0 : i32
    return %c0_i32, %c0_i32_0 : i32, i32
  }
  func.func @transform_5(%arg0: i32) -> (i32, i32) {
    %c0_i32 = arith.constant 0 : i32
    %c0_i32_0 = arith.constant 0 : i32
    %c0_i32_1 = arith.constant 0 : i32
    return %c0_i32, %c0_i32_0 : i32, i32
  }
  func.func @transform_6(%arg0: i32) -> (i32, i32) {
    %c0_i32 = arith.constant 0 : i32
    %c0_i32_0 = arith.constant 0 : i32
    return %arg0, %c0_i32 : i32, i32
  }
}

</mosaic_0001>

<llo_original>
// kernel: resnet_forward.4
$region0: #{resnet_forward.4}
  #allocation0 [shape = 'u32[]', space=smem, size = 0x4, offset = 0x4, fixed_abs, tag = 'smem constant byte address 0x4 - core index']
  #allocation1 [shape = 'u32[144,128]{1,0:T(1,128)}', space=vmem, size = 0x12000, scoped, tag = 'internal scratch']
  %s0 = inlined_call_operand.hbm [shape: f32[8,9,9,16], index: 0, kind: input, shape index: {}]
  %s1 = inlined_call_operand.hbm [shape: f32[64,8], index: 1, kind: input, shape index: {}]
  %s2 = inlined_call_operand.hbm [shape: f32[1,8], index: 2, kind: input, shape index: {}]
  %s3 = inlined_call_operand.hbm [shape: f32[8,64,8], index: 3, kind: output, shape index: {0}]
  %s4 = inlined_call_operand.hbm [shape: f32[4,2,8], index: 4, kind: output, shape index: {1}]
  %5 = xla_tuple %s3, %s4
  %s6 = sld [smem:[#allocation0]]
  $region65: #{resnet_forward.4} parent=0
    _
  %s8 = ssub.s32 1, %s6
  %s9 = scalar_select 0, %s8, %s6
  $region1: #{resnet_forward.4} parent=0
    #allocation2 [shape = 'u8[294912]{0}', space=vmem, size = 0x48000, scoped, tag = 'input window, operand 0']
    #allocation3 [shape = 's32[2]{0}', space=sflag, size = 0x8, scoped, tag = 'scoped memory for resnet_forward.4']
    #allocation4 [shape = 's32[2]{0}', space=sflag, size = 0x8, scoped, tag = 'scoped memory for resnet_forward.4']
    #allocation5 [shape = 'u8[32768]{0}', space=vmem, size = 0x8000, scoped, tag = 'input window, operand 1, single buffered']
    #allocation6 [shape = 's32[1]{0}', space=sflag, size = 0x4, scoped, tag = 'scoped memory for resnet_forward.4']
    #allocation7 [shape = 'u8[512]{0}', space=vmem, size = 0x400, scoped, tag = 'input window, operand 2, single buffered']
    #allocation8 [shape = 'u8[131072]{0}', space=vmem, size = 0x20000, scoped, tag = 'output window, operand 0']
    #allocation9 [shape = 'u8[2048]{0}', space=vmem, size = 0x800, scoped, tag = 'output window, operand 1']
    #allocation10 [shape = 's32[2]{0}', space=sflag, size = 0x8, scoped, tag = 'scoped memory for resnet_forward.4']
    %10 = vsyncpa [#allocation3], 0
    %s11 = scalar_lea.sflag [#allocation3], 1
    %12 = vsyncpa %s11, 0
    %13 = vsyncpa [#allocation6], 0
    %14 = vsyncpa [#allocation4], 0
    %s15 = scalar_lea.sflag [#allocation4], 1
    %16 = vsyncpa %s15, 0
    %17 = vsyncpa [#allocation10], 0
    %s18 = scalar_lea.sflag [#allocation10], 1
    %19 = vsyncpa %s18, 0
    loop: start=0, step=1, limit=6
    $region2: #{resnet_forward.4} parent=1 // loop_pre_header
      _
    $region3: #{resnet_forward.4} parent=1 // loop_header
      %s21 = sphi 0, %s25
      %p22 = scmp.ge.s32.totalorder %s21, 6
      %s31 = sphi 0, %s33
      %s34 = sphi 0, %s31
      %s35 = sphi 0, %s34
      %s51 = sphi 0, %s35
      %s55 = sphi 0, %s55
      %s57 = sphi 0, %s55
      %s58 = sphi 0, %s57
      %s72 = sphi 0, %s58
      %s76 = sphi 0, %s76
      %s78 = sphi 0, %s76
      %s79 = sphi 0, %s78
      %s93 = sphi 0, %s79
      %s99 = sphi 0, %s101
      %s102 = sphi 0, %s99
      %s103 = sphi 0, %s102
      %s119 = sphi 0, %s103
      %s125 = sphi 0, %s127
      %s128 = sphi 0, %s125
      %s129 = sphi 0, %s128
      %s145 = sphi 0, %s129
    $region4: #{resnet_forward.4} parent=1 // loop_header_branch
      %24 = sbr.rel (%p22) target = $region8
    $region5: #{resnet_forward.4} parent=1 // loop_body
      %s26 = ssub.s32 %s21, 1
      %s27 = ssub.s32 %s21, 2
      %s28 = sadd.s32 %s21, 1
      %s29 = ssub.s32 %s21, %s28
      %p30 = scmp.eq.s32.totalorder %s29, 0
      %s32 = sadd.s32 %s31, 1
      %s33 = scalar_select %p30, %s31, %s32
      %p36 = pneg %p30
      %p37 = scmp.eq.s32.totalorder %s21, 3
      %p38 = por %p36, %p37
      %p39 = scmp.ne.s32.totalorder %s31, %s34
      %p40 = scmp.eq.s32.totalorder %s21, 0
      %p41 = por %p39, %p40
      %p42 = scmp.ne.s32.totalorder %s31, %s34
      %p43 = scmp.eq.s32.totalorder %s26, 3
      %p44 = por %p42, %p43
      %p45 = scmp.ne.s32.totalorder %s34, %s35
      %p46 = scmp.eq.s32.totalorder %s26, 0
      %p47 = por %p45, %p46
      %p48 = scmp.ne.s32.totalorder %s34, %s35
      %p49 = scmp.eq.s32.totalorder %s27, 3
      %p50 = por %p48, %p49
      %p52 = scmp.ne.s32.totalorder %s35, %s51
      %p53 = scmp.eq.s32.totalorder %s27, 0
      %p54 = por %p52, %p53
      %s56 = sadd.s32 %s55, 1
      %p59 = scmp.eq.s32.totalorder %s21, 3
      %p60 = scmp.ne.s32.totalorder %s55, %s57
      %p61 = scmp.eq.s32.totalorder %s21, 0
      %p62 = por %p60, %p61
      %p63 = scmp.ne.s32.totalorder %s55, %s57
      %p64 = scmp.eq.s32.totalorder %s26, 3
      %p65 = por %p63, %p64
      %p66 = scmp.ne.s32.totalorder %s57, %s58
      %p67 = scmp.eq.s32.totalorder %s26, 0
      %p68 = por %p66, %p67
      %p69 = scmp.ne.s32.totalorder %s57, %s58
      %p70 = scmp.eq.s32.totalorder %s27, 3
      %p71 = por %p69, %p70
      %p73 = scmp.ne.s32.totalorder %s58, %s72
      %p74 = scmp.eq.s32.totalorder %s27, 0
      %p75 = por %p73, %p74
      %s77 = sadd.s32 %s76, 1
      %p80 = scmp.eq.s32.totalorder %s21, 3
      %p81 = scmp.ne.s32.totalorder %s76, %s78
      %p82 = scmp.eq.s32.totalorder %s21, 0
      %p83 = por %p81, %p82
      %p84 = scmp.ne.s32.totalorder %s76, %s78
      %p85 = scmp.eq.s32.totalorder %s26, 3
      %p86 = por %p84, %p85
      %p87 = scmp.ne.s32.totalorder %s78, %s79
      %p88 = scmp.eq.s32.totalorder %s26, 0
      %p89 = por %p87, %p88
      %p90 = scmp.ne.s32.totalorder %s78, %s79
      %p91 = scmp.eq.s32.totalorder %s27, 3
      %p92 = por %p90, %p91
      %p94 = scmp.ne.s32.totalorder %s79, %s93
      %p95 = scmp.eq.s32.totalorder %s27, 0
      %p96 = por %p94, %p95
      %s97 = ssub.s32 %s21, %s28
      %p98 = scmp.eq.s32.totalorder %s97, 0
      %s100 = sadd.s32 %s99, 1
      %s101 = scalar_select %p98, %s99, %s100
      %p104 = pneg %p98
      %p105 = scmp.eq.s32.totalorder %s21, 3
      %p106 = por %p104, %p105
      %p107 = scmp.ne.s32.totalorder %s99, %s102
      %p108 = scmp.eq.s32.totalorder %s21, 0
      %p109 = por %p107, %p108
      %p110 = scmp.ne.s32.totalorder %s99, %s102
      %p111 = scmp.eq.s32.totalorder %s26, 3
      %p112 = por %p110, %p111
      %p113 = scmp.ne.s32.totalorder %s102, %s103
      %p114 = scmp.eq.s32.totalorder %s26, 0
      %p115 = por %p113, %p114
      %p116 = scmp.ne.s32.totalorder %s102, %s103
      %p117 = scmp.eq.s32.totalorder %s27, 3
      %p118 = por %p116, %p117
      %p120 = scmp.ne.s32.totalorder %s103, %s119
      %p121 = scmp.eq.s32.totalorder %s27, 0
      %p122 = por %p120, %p121
      %s123 = ssub.s32 %s21, %s28
      %p124 = scmp.eq.s32.totalorder %s123, 0
      %s126 = sadd.s32 %s125, 1
      %s127 = scalar_select %p124, %s125, %s126
      %p130 = pneg %p124
      %p131 = scmp.eq.s32.totalorder %s21, 3
      %p132 = por %p130, %p131
      %p133 = scmp.ne.s32.totalorder %s125, %s128
      %p134 = scmp.eq.s32.totalorder %s21, 0
      %p135 = por %p133, %p134
      %p136 = scmp.ne.s32.totalorder %s125, %s128
      %p137 = scmp.eq.s32.totalorder %s26, 3
      %p138 = por %p136, %p137
      %p139 = scmp.ne.s32.totalorder %s128, %s129
      %p140 = scmp.eq.s32.totalorder %s26, 0
      %p141 = por %p139, %p140
      %p142 = scmp.ne.s32.totalorder %s128, %s129
      %p143 = scmp.eq.s32.totalorder %s27, 3
      %p144 = por %p142, %p143
      %p146 = scmp.ne.s32.totalorder %s129, %s145
      %p147 = scmp.eq.s32.totalorder %s27, 0
      %p148 = por %p146, %p147
      %p149 = scmp.le.s32.totalorder 1, %s21
      %p150 = scmp.lt.s32.totalorder %s21, 5
      %p151 = pnand %p149, %p150
      %p152 = pneg %p151
      // Predicated region
      $region9: #{resnet_forward.4} parent=5 // pred_check
        _
      $region10: #{resnet_forward.4} parent=5 // pred_check_branch
        %154 = sbr.rel (%p151) target = $region12
      $region11: #{resnet_forward.4} parent=5 // pred_region
        %s155 = ssub.s32 %s21, 1
        // Predicated region
        $region13: #{resnet_forward.4} parent=11 // pred_check
          %p156 = pneg %p68
        $region14: #{resnet_forward.4} parent=11 // pred_check_branch
          %158 = sbr.rel (%p156) target = $region16
        $region15: #{resnet_forward.4} parent=11 // pred_region
          %s160 = ssub.s32 1024, 1024
          %161 = vsyncadd [#allocation6], %s160
          %s162 = sshll.u32 [#allocation5], 4
          %s163 = int_to_ptr.vmem [resolvable:$true] %s162
          %168 = dma.hbm_to_vmem [thread:$0]  %s1, 1024, %s163, [#allocation6], 128, 128, 8
        $region16: #{resnet_forward.4} parent=11 // pred_fallthru
          _
        // Predicated region
        $region17: #{resnet_forward.4} parent=11 // pred_check
          %p169 = pneg %p89
        $region18: #{resnet_forward.4} parent=11 // pred_check_branch
          %171 = sbr.rel (%p169) target = $region20
        $region19: #{resnet_forward.4} parent=11 // pred_region
          %s173 = ssub.s32 16, 16
          %174 = vsyncadd [#allocation6], %s173
          %s176 = sshll.u32 [#allocation7], 4
          %s177 = int_to_ptr.vmem [resolvable:$true] %s176
          %179 = dma.hbm_to_vmem [thread:$0]  %s2, 16, %s177, [#allocation6]
        $region20: #{resnet_forward.4} parent=11 // pred_fallthru
          _
      $region12: #{resnet_forward.4} parent=5 // pred_fallthru
        _
      %p180 = scmp.lt.s32.totalorder %s21, 4
      // Predicated region
      $region21: #{resnet_forward.4} parent=5 // pred_check
        %p181 = pneg %p180
      $region22: #{resnet_forward.4} parent=5 // pred_check_branch
        %183 = sbr.rel (%p181) target = $region24
      $region23: #{resnet_forward.4} parent=5 // pred_region
        // Predicated region
        $region25: #{resnet_forward.4} parent=23 // pred_check
          %p184 = pneg %p41
        $region26: #{resnet_forward.4} parent=23 // pred_check_branch
          %186 = sbr.rel (%p184) target = $region28
        $region27: #{resnet_forward.4} parent=23 // pred_region
          %s187 = sand.u32 %s31, 1
          %s188 = scalar_lea.sflag [#allocation3], %s187
          %s189 = sand.u32 %s31, 1
          %s190 = smul.addr %s189, 288
          %s191 = scalar_lea.vmem [#allocation2], %s190
          %s192 = smul.u32 2, %s21
          %s194 = ssub.s32 4608, 4608
          %195 = vsyncadd %s188, %s194
          %s196 = smul.addr %s192, 18
          %s197 = smul.addr %s196, 128
          %s198 = scalar_lea.hbm %s0, %s197
          %s199 = sshll.u32 %s191, 4
          %s200 = int_to_ptr.vmem [resolvable:$true] %s199
          %205 = dma.hbm_to_vmem [thread:$0]  %s198, 4608, %s200, %s188, 128, 128, 8
        $region28: #{resnet_forward.4} parent=23 // pred_fallthru
          _
      $region24: #{resnet_forward.4} parent=5 // pred_fallthru
        _
      %p206 = scmp.le.s32.totalorder 1, %s21
      %p207 = scmp.lt.s32.totalorder %s21, 5
      %p208 = pnand %p206, %p207
      %p209 = pneg %p208
      // Predicated region
      $region29: #{resnet_forward.4} parent=5 // pred_check
        _
      $region30: #{resnet_forward.4} parent=5 // pred_check_branch
        %211 = sbr.rel (%p208) target = $region32
      $region31: #{resnet_forward.4} parent=5 // pred_region
        %s212 = ssub.s32 %s21, 1
        %s213 = sand.u32 %s34, 1
        %s214 = scalar_lea.sflag [#allocation3], %s213
        %s215 = sand.u32 %s34, 1
        %s216 = smul.addr %s215, 288
        %s217 = scalar_lea.vmem [#allocation2], %s216
        // Predicated region
        $region33: #{resnet_forward.4} parent=31 // pred_check
          %p218 = pneg %p47
        $region34: #{resnet_forward.4} parent=31 // pred_check_branch
          %220 = sbr.rel (%p218) target = $region36
        $region35: #{resnet_forward.4} parent=31 // pred_region
          %221 = dma.done %s214, 4608
        $region36: #{resnet_forward.4} parent=31 // pred_fallthru
          _
        // Predicated region
        $region37: #{resnet_forward.4} parent=31 // pred_check
          %p222 = pneg %p68
        $region38: #{resnet_forward.4} parent=31 // pred_check_branch
          %224 = sbr.rel (%p222) target = $region40
        $region39: #{resnet_forward.4} parent=31 // pred_region
          %225 = dma.done [#allocation6], 1024
        $region40: #{resnet_forward.4} parent=31 // pred_fallthru
          _
        // Predicated region
        $region41: #{resnet_forward.4} parent=31 // pred_check
          %p226 = pneg %p89
        $region42: #{resnet_forward.4} parent=31 // pred_check_branch
          %228 = sbr.rel (%p226) target = $region44
        $region43: #{resnet_forward.4} parent=31 // pred_region
          %229 = dma.done [#allocation6], 16
        $region44: #{resnet_forward.4} parent=31 // pred_fallthru
          _
        %s230 = sand.u32 %s34, 1
        %s231 = scalar_lea.sflag [#allocation3], %s230
        %s232 = sand.u32 %s34, 1
        %s233 = smul.addr %s232, 288
        %s234 = scalar_lea.vmem [#allocation2], %s233
        %p235 = pneg %p47
        %p236 = pneg %p44
        %p237 = pneg %p68
        %p238 = pneg %p65
        %p239 = pneg %p89
        %p240 = pneg %p86
        %p241 = pneg %p115
        %p242 = pneg %p112
        %s243 = sand.u32 %s102, 1
        %s244 = scalar_lea.sflag [#allocation4], %s243
        %s245 = sand.u32 %s102, 1
        %s246 = smul.addr %s245, 128
        %s247 = scalar_lea.vmem [#allocation8], %s246
        %p248 = pneg %p141
        %p249 = pneg %p138
        %s250 = sand.u32 %s128, 1
        %s251 = scalar_lea.sflag [#allocation10], %s250
        %s252 = sand.u32 %s128, 1
        %s253 = smul.addr %s252, 2
        %s254 = scalar_lea.vmem [#allocation9], %s253
        %s255 = smul.u32 2, %s26
        %s256 = smul.u32 2, %s26
        %v257 = vld [vmem:[%s217] sm:$0xff]
        %v258 = vld [vmem:[%s217 + $0x10] sm:$0xff]
        %v259 = vld [vmem:[%s217 + $0x20] sm:$0xff]
        %v260 = vld [vmem:[%s217 + $0x30] sm:$0xff]
        %v261 = vld [vmem:[%s217 + $0x40] sm:$0xff]
        %v262 = vld [vmem:[%s217 + $0x50] sm:$0xff]
        %v263 = vld [vmem:[%s217 + $0x60] sm:$0xff]
        %v264 = vld [vmem:[%s217 + $0x70] sm:$0xff]
        %v265 = vld [vmem:[%s217 + $0x90] sm:$0xff]
        %v266 = vld [vmem:[%s217 + $0xa0] sm:$0xff]
        %v267 = vld [vmem:[%s217 + $0xb0] sm:$0xff]
        %v268 = vld [vmem:[%s217 + $0xc0] sm:$0xff]
        %v269 = vld [vmem:[%s217 + $0xd0] sm:$0xff]
        %v270 = vld [vmem:[%s217 + $0xe0] sm:$0xff]
        %v271 = vld [vmem:[%s217 + $0xf0] sm:$0xff]
        %v272 = vld [vmem:[%s217 + $0x100] sm:$0xff]
        %v273 = vld [vmem:[%s217 + $0x1] sm:$0xff]
        %v274 = vld [vmem:[%s217 + $0x11] sm:$0xff]
        %v275 = vld [vmem:[%s217 + $0x21] sm:$0xff]
        %v276 = vld [vmem:[%s217 + $0x31] sm:$0xff]
        %v277 = vld [vmem:[%s217 + $0x41] sm:$0xff]
        %v278 = vld [vmem:[%s217 + $0x51] sm:$0xff]
        %v279 = vld [vmem:[%s217 + $0x61] sm:$0xff]
        %v280 = vld [vmem:[%s217 + $0x71] sm:$0xff]
        %v281 = vld [vmem:[%s217 + $0x91] sm:$0xff]
        %v282 = vld [vmem:[%s217 + $0xa1] sm:$0xff]
        %v283 = vld [vmem:[%s217 + $0xb1] sm:$0xff]
        %v284 = vld [vmem:[%s217 + $0xc1] sm:$0xff]
        %v285 = vld [vmem:[%s217 + $0xd1] sm:$0xff]
        %v286 = vld [vmem:[%s217 + $0xe1] sm:$0xff]
        %v287 = vld [vmem:[%s217 + $0xf1] sm:$0xff]
        %v288 = vld [vmem:[%s217 + $0x101] sm:$0xff]
        %s289 = scalar_lea.vmem %s217, 16 [#allocation2]
        %v290 = vld [vmem:[%s289] sm:$0xff]
        %v291 = vld [vmem:[%s289 + $0x10] sm:$0xff]
        %v292 = vld [vmem:[%s289 + $0x20] sm:$0xff]
        %v293 = vld [vmem:[%s289 + $0x30] sm:$0xff]
        %v294 = vld [vmem:[%s289 + $0x40] sm:$0xff]
        %v295 = vld [vmem:[%s289 + $0x50] sm:$0xff]
        %v296 = vld [vmem:[%s289 + $0x60] sm:$0xff]
        %v297 = vld [vmem:[%s289 + $0x70] sm:$0xff]
        %v298 = vld [vmem:[%s289 + $0x90] sm:$0xff]
        %v299 = vld [vmem:[%s289 + $0xa0] sm:$0xff]
        %v300 = vld [vmem:[%s289 + $0xb0] sm:$0xff]
        %v301 = vld [vmem:[%s289 + $0xc0] sm:$0xff]
        %v302 = vld [vmem:[%s289 + $0xd0] sm:$0xff]
        %v303 = vld [vmem:[%s289 + $0xe0] sm:$0xff]
        %v304 = vld [vmem:[%s289 + $0xf0] sm:$0xff]
        %v305 = vld [vmem:[%s289 + $0x100] sm:$0xff]
        %v306 = vld [vmem:[%s289 + $0x1] sm:$0xff]
        %v307 = vld [vmem:[%s289 + $0x11] sm:$0xff]
        %v308 = vld [vmem:[%s289 + $0x21] sm:$0xff]
        %v309 = vld [vmem:[%s289 + $0x31] sm:$0xff]
        %v310 = vld [vmem:[%s289 + $0x41] sm:$0xff]
        %v311 = vld [vmem:[%s289 + $0x51] sm:$0xff]
        %v312 = vld [vmem:[%s289 + $0x61] sm:$0xff]
        %v313 = vld [vmem:[%s289 + $0x71] sm:$0xff]
        %v314 = vld [vmem:[%s289 + $0x91] sm:$0xff]
        %v315 = vld [vmem:[%s289 + $0xa1] sm:$0xff]
        %v316 = vld [vmem:[%s289 + $0xb1] sm:$0xff]
        %v317 = vld [vmem:[%s289 + $0xc1] sm:$0xff]
        %v318 = vld [vmem:[%s289 + $0xd1] sm:$0xff]
        %v319 = vld [vmem:[%s289 + $0xe1] sm:$0xff]
        %v320 = vld [vmem:[%s289 + $0xf1] sm:$0xff]
        %v321 = vld [vmem:[%s289 + $0x101] sm:$0xff]
        %338 = vrot.lane.b32.xlu0 %v273, 16
        %v339 = vpop.permute.xlu0 %338
        %340 = vrot.lane.b32.xlu0 %v274, 16
        %v341 = vpop.permute.xlu0 %340
        %342 = vrot.lane.b32.xlu0 %v275, 16
        %v343 = vpop.permute.xlu0 %342
        %344 = vrot.lane.b32.xlu0 %v276, 16
        %v345 = vpop.permute.xlu0 %344
        %346 = vrot.lane.b32.xlu0 %v277, 16
        %v347 = vpop.permute.xlu0 %346
        %348 = vrot.lane.b32.xlu0 %v278, 16
        %v349 = vpop.permute.xlu0 %348
        %350 = vrot.lane.b32.xlu0 %v279, 16
        %v351 = vpop.permute.xlu0 %350
        %352 = vrot.lane.b32.xlu0 %v280, 16
        %v353 = vpop.permute.xlu0 %352
        %354 = vrot.lane.b32.xlu0 %v281, 16
        %v355 = vpop.permute.xlu0 %354
        %356 = vrot.lane.b32.xlu0 %v282, 16
        %v357 = vpop.permute.xlu0 %356
        %358 = vrot.lane.b32.xlu0 %v283, 16
        %v359 = vpop.permute.xlu0 %358
        %360 = vrot.lane.b32.xlu0 %v284, 16
        %v361 = vpop.permute.xlu0 %360
        %362 = vrot.lane.b32.xlu0 %v285, 16
        %v363 = vpop.permute.xlu0 %362
        %364 = vrot.lane.b32.xlu0 %v286, 16
        %v365 = vpop.permute.xlu0 %364
        %366 = vrot.lane.b32.xlu0 %v287, 16
        %v367 = vpop.permute.xlu0 %366
        %368 = vrot.lane.b32.xlu0 %v288, 16
        %v369 = vpop.permute.xlu0 %368
        %402 = vrot.lane.b32.xlu0 %v290, 32
        %v403 = vpop.permute.xlu0 %402
        %404 = vrot.lane.b32.xlu0 %v291, 32
        %v405 = vpop.permute.xlu0 %404
        %406 = vrot.lane.b32.xlu0 %v292, 32
        %v407 = vpop.permute.xlu0 %406
        %408 = vrot.lane.b32.xlu0 %v293, 32
        %v409 = vpop.permute.xlu0 %408
        %410 = vrot.lane.b32.xlu0 %v294, 32
        %v411 = vpop.permute.xlu0 %410
        %412 = vrot.lane.b32.xlu0 %v295, 32
        %v413 = vpop.permute.xlu0 %412
        %414 = vrot.lane.b32.xlu0 %v296, 32
        %v415 = vpop.permute.xlu0 %414
        %416 = vrot.lane.b32.xlu0 %v297, 32
        %v417 = vpop.permute.xlu0 %416
        %418 = vrot.lane.b32.xlu0 %v298, 32
        %v419 = vpop.permute.xlu0 %418
        %420 = vrot.lane.b32.xlu0 %v299, 32
        %v421 = vpop.permute.xlu0 %420
        %422 = vrot.lane.b32.xlu0 %v300, 32
        %v423 = vpop.permute.xlu0 %422
        %424 = vrot.lane.b32.xlu0 %v301, 32
        %v425 = vpop.permute.xlu0 %424
        %426 = vrot.lane.b32.xlu0 %v302, 32
        %v427 = vpop.permute.xlu0 %426
        %428 = vrot.lane.b32.xlu0 %v303, 32
        %v429 = vpop.permute.xlu0 %428
        %430 = vrot.lane.b32.xlu0 %v304, 32
        %v431 = vpop.permute.xlu0 %430
        %432 = vrot.lane.b32.xlu0 %v305, 32
        %v433 = vpop.permute.xlu0 %432
        %466 = vrot.lane.b32.xlu0 %v306, 48
        %v467 = vpop.permute.xlu0 %466
        %468 = vrot.lane.b32.xlu0 %v307, 48
        %v469 = vpop.permute.xlu0 %468
        %470 = vrot.lane.b32.xlu0 %v308, 48
        %v471 = vpop.permute.xlu0 %470
        %472 = vrot.lane.b32.xlu0 %v309, 48
        %v473 = vpop.permute.xlu0 %472
        %474 = vrot.lane.b32.xlu0 %v310, 48
        %v475 = vpop.permute.xlu0 %474
        %476 = vrot.lane.b32.xlu0 %v311, 48
        %v477 = vpop.permute.xlu0 %476
        %478 = vrot.lane.b32.xlu0 %v312, 48
        %v479 = vpop.permute.xlu0 %478
        %480 = vrot.lane.b32.xlu0 %v313, 48
        %v481 = vpop.permute.xlu0 %480
        %482 = vrot.lane.b32.xlu0 %v314, 48
        %v483 = vpop.permute.xlu0 %482
        %484 = vrot.lane.b32.xlu0 %v315, 48
        %v485 = vpop.permute.xlu0 %484
        %486 = vrot.lane.b32.xlu0 %v316, 48
        %v487 = vpop.permute.xlu0 %486
        %488 = vrot.lane.b32.xlu0 %v317, 48
        %v489 = vpop.permute.xlu0 %488
        %490 = vrot.lane.b32.xlu0 %v318, 48
        %v491 = vpop.permute.xlu0 %490
        %492 = vrot.lane.b32.xlu0 %v319, 48
        %v493 = vpop.permute.xlu0 %492
        %494 = vrot.lane.b32.xlu0 %v320, 48
        %v495 = vpop.permute.xlu0 %494
        %496 = vrot.lane.b32.xlu0 %v321, 48
        %v497 = vpop.permute.xlu0 %496
        %vm514 = vcmask 130048
        %v515 = vsel %vm514, %v257, %v339
        %v516 = vsel %vm514, %v258, %v341
        %v517 = vsel %vm514, %v259, %v343
        %v518 = vsel %vm514, %v260, %v345
        %v519 = vsel %vm514, %v261, %v347
        %v520 = vsel %vm514, %v262, %v349
        %v521 = vsel %vm514, %v263, %v351
        %v522 = vsel %vm514, %v264, %v353
        %v523 = vsel %vm514, %v265, %v355
        %v524 = vsel %vm514, %v266, %v357
        %v525 = vsel %vm514, %v267, %v359
        %v526 = vsel %vm514, %v268, %v361
        %v527 = vsel %vm514, %v269, %v363
        %v528 = vsel %vm514, %v270, %v365
        %v529 = vsel %vm514, %v271, %v367
        %v530 = vsel %vm514, %v272, %v369
        %vm531 = vcmask 261120
        %v532 = vsel %vm531, %v515, %v403
        %v533 = vsel %vm531, %v516, %v405
        %v534 = vsel %vm531, %v517, %v407
        %v535 = vsel %vm531, %v518, %v409
        %v536 = vsel %vm531, %v519, %v411
        %v537 = vsel %vm531, %v520, %v413
        %v538 = vsel %vm531, %v521, %v415
        %v539 = vsel %vm531, %v522, %v417
        %v540 = vsel %vm531, %v523, %v419
        %v541 = vsel %vm531, %v524, %v421
        %v542 = vsel %vm531, %v525, %v423
        %v543 = vsel %vm531, %v526, %v425
        %v544 = vsel %vm531, %v527, %v427
        %v545 = vsel %vm531, %v528, %v429
        %v546 = vsel %vm531, %v529, %v431
        %v547 = vsel %vm531, %v530, %v433
        %vm548 = vcmask 392192
        %v549 = vsel %vm548, %v532, %v467
        %v550 = vsel %vm548, %v533, %v469
        %v551 = vsel %vm548, %v534, %v471
        %v552 = vsel %vm548, %v535, %v473
        %v553 = vsel %vm548, %v536, %v475
        %v554 = vsel %vm548, %v537, %v477
        %v555 = vsel %vm548, %v538, %v479
        %v556 = vsel %vm548, %v539, %v481
        %v557 = vsel %vm548, %v540, %v483
        %v558 = vsel %vm548, %v541, %v485
        %v559 = vsel %vm548, %v542, %v487
        %v560 = vsel %vm548, %v543, %v489
        %v561 = vsel %vm548, %v544, %v491
        %v562 = vsel %vm548, %v545, %v493
        %v563 = vsel %vm548, %v546, %v495
        %v564 = vsel %vm548, %v547, %v497
        %v565 = vld [vmem:[#allocation5] sm:$0xff]
        %v566 = vld [vmem:[#allocation5 + $0x8] sm:$0xff]
        %v567 = vld [vmem:[#allocation5 + $0x10] sm:$0xff]
        %v568 = vld [vmem:[#allocation5 + $0x18] sm:$0xff]
        %v569 = vld [vmem:[#allocation5 + $0x20] sm:$0xff]
        %v570 = vld [vmem:[#allocation5 + $0x28] sm:$0xff]
        %v571 = vld [vmem:[#allocation5 + $0x30] sm:$0xff]
        %v572 = vld [vmem:[#allocation5 + $0x38] sm:$0xff]
        %v573 = vld [vmem:[#allocation7] sm:$0x1]
        %v575 = vlaneseq
        %v576 = vshrl.u32 %v575, 7
        %v577 = vsub.s32 0, %v576
        %v578 = vrot.slane %v573, %v577
        %vm580 = vcmask 523264
        %v582 = vsel %vm580, %v549, 0
        %v585 = vsel %vm580, %v550, 0
        %v588 = vsel %vm580, %v551, 0
        %v591 = vsel %vm580, %v552, 0
        %v594 = vsel %vm580, %v553, 0
        %v597 = vsel %vm580, %v554, 0
        %v600 = vsel %vm580, %v555, 0
        %v603 = vsel %vm580, %v556, 0
        %v606 = vsel %vm580, %v557, 0
        %v609 = vsel %vm580, %v558, 0
        %v612 = vsel %vm580, %v559, 0
        %v615 = vsel %vm580, %v560, 0
        %v618 = vsel %vm580, %v561, 0
        %v621 = vsel %vm580, %v562, 0
        %v624 = vsel %vm580, %v563, 0
        %v627 = vsel %vm580, %v564, 0
        %629 = vmatprep.subr.mxu0 0.0
        %630 = vmatpush1.msra.mxu0 %v565
        %631 = vmatprep.subr.mxu0 0.0
        %632 = vmatpush1.msra.mxu0 %v566
        %633 = vmatprep.subr.mxu0 0.0
        %634 = vmatpush1.msra.mxu0 %v567
        %635 = vmatprep.subr.mxu0 0.0
        %636 = vmatpush1.msra.mxu0 %v568
        %637 = vmatprep.subr.mxu0 0.0
        %638 = vmatpush1.msra.mxu0 %v569
        %639 = vmatprep.subr.mxu0 0.0
        %640 = vmatpush1.msra.mxu0 %v570
        %641 = vmatprep.subr.mxu0 0.0
        %642 = vmatpush1.msra.mxu0 %v571
        %643 = vmatprep.subr.mxu0 0.0
        %644 = vmatpush1.msra.mxu0 %v572
        %645 = vmatprep.subr.mxu0 0.0
        %646 = vmatpush1.msra.mxu0 0.0
        %647 = vmatprep.subr.mxu0 0.0
        %648 = vmatpush1.msra.mxu0 0.0
        %649 = vmatprep.subr.mxu0 0.0
        %650 = vmatpush1.msra.mxu0 0.0
        %651 = vmatprep.subr.mxu0 0.0
        %652 = vmatpush1.msra.mxu0 0.0
        %653 = vmatprep.subr.mxu0 0.0
        %654 = vmatpush1.msra.mxu0 0.0
        %655 = vmatprep.subr.mxu0 0.0
        %656 = vmatpush1.msra.mxu0 0.0
        %657 = vmatprep.subr.mxu0 0.0
        %658 = vmatpush1.msra.mxu0 0.0
        %659 = vmatprep.subr.mxu0 0.0
        %660 = vmatpush1.msra.mxu0 0.0
        %661 = vmatprep.subr.mxu0 0.0
        %662 = vmatpush1.msra.mxu0 0.0
        %663 = vmatprep.subr.mxu0 0.0
        %664 = vmatpush1.msra.mxu0 0.0
        %665 = vmatprep.subr.mxu0 0.0
        %666 = vmatpush1.msra.mxu0 0.0
        %667 = vmatprep.subr.mxu0 0.0
        %668 = vmatpush1.msra.mxu0 0.0
        %669 = vmatprep.subr.mxu0 0.0
        %670 = vmatpush1.msra.mxu0 0.0
        %671 = vmatprep.subr.mxu0 0.0
        %672 = vmatpush1.msra.mxu0 0.0
        %673 = vmatprep.subr.mxu0 0.0
        %674 = vmatpush1.msra.mxu0 0.0
        %675 = vmatprep.subr.mxu0 0.0
        %676 = vmatpush1.msra.mxu0 0.0
        %677 = vmatprep.subr.mxu0 0.0
        %678 = vmatpush1.msra.mxu0 0.0
        %679 = vmatprep.subr.mxu0 0.0
        %680 = vmatpush1.msra.mxu0 0.0
        %681 = vmatprep.subr.mxu0 0.0
        %682 = vmatpush1.msra.mxu0 0.0
        %683 = vmatprep.subr.mxu0 0.0
        %684 = vmatpush1.msra.mxu0 0.0
        %685 = vmatprep.subr.mxu0 0.0
        %686 = vmatpush1.msra.mxu0 0.0
        %687 = vmatprep.subr.mxu0 0.0
        %688 = vmatpush1.msra.mxu0 0.0
        %689 = vmatprep.subr.mxu0 0.0
        %690 = vmatpush1.msra.mxu0 0.0
        %691 = vmatprep.subr.mxu0 0.0
        %692 = vmatpush1.msra.mxu0 0.0
        %693 = vmatprep.mubr.f32.mxu0 0.0
        %694 = vmatmul.mubr.f32.gmra.mrb[0].mxu0 %v582
        %v695 = vpop.f32.mrb[0].mxu0
        %v696 = vadd.f32 %v578, %v695
        %v697 = vpop.f32.mrb[0].mxu0
        %698 = vmatprep.mubr.f32.mxu0 0.0
        %699 = vmatmul.mubr.f32.gmra.mrb[0].mxu0 %v585
        %v700 = vpop.f32.mrb[0].mxu0
        %v701 = vadd.f32 %v578, %v700
        %v702 = vpop.f32.mrb[0].mxu0
        %703 = vmatprep.mubr.f32.mxu0 0.0
        %704 = vmatmul.mubr.f32.gmra.mrb[0].mxu0 %v588
        %v705 = vpop.f32.mrb[0].mxu0
        %v706 = vadd.f32 %v578, %v705
        %v707 = vpop.f32.mrb[0].mxu0
        %708 = vmatprep.mubr.f32.mxu0 0.0
        %709 = vmatmul.mubr.f32.gmra.mrb[0].mxu0 %v591
        %v710 = vpop.f32.mrb[0].mxu0
        %v711 = vadd.f32 %v578, %v710
        %v712 = vpop.f32.mrb[0].mxu0
        %713 = vmatprep.mubr.f32.mxu0 0.0
        %714 = vmatmul.mubr.f32.gmra.mrb[0].mxu0 %v594
        %v715 = vpop.f32.mrb[0].mxu0
        %v716 = vadd.f32 %v578, %v715
        %v717 = vpop.f32.mrb[0].mxu0
        %718 = vmatprep.mubr.f32.mxu0 0.0
        %719 = vmatmul.mubr.f32.gmra.mrb[0].mxu0 %v597
        %v720 = vpop.f32.mrb[0].mxu0
        %v721 = vadd.f32 %v578, %v720
        %v722 = vpop.f32.mrb[0].mxu0
        %723 = vmatprep.mubr.f32.mxu0 0.0
        %724 = vmatmul.mubr.f32.gmra.mrb[0].mxu0 %v600
        %v725 = vpop.f32.mrb[0].mxu0
        %v726 = vadd.f32 %v578, %v725
        %v727 = vpop.f32.mrb[0].mxu0
        %728 = vmatprep.mubr.f32.mxu0 0.0
        %729 = vmatmul.mubr.f32.gmra.mrb[0].mxu0 %v603
        %v730 = vpop.f32.mrb[0].mxu0
        %v731 = vadd.f32 %v578, %v730
        %v732 = vpop.f32.mrb[0].mxu0
        %733 = vmatprep.mubr.f32.mxu0 0.0
        %734 = vmatmul.mubr.f32.gmra.mrb[0].mxu0 %v606
        %v735 = vpop.f32.mrb[0].mxu0
        %v736 = vadd.f32 %v578, %v735
        %v737 = vpop.f32.mrb[0].mxu0
        %738 = vmatprep.mubr.f32.mxu0 0.0
        %739 = vmatmul.mubr.f32.gmra.mrb[0].mxu0 %v609
        %v740 = vpop.f32.mrb[0].mxu0
        %v741 = vadd.f32 %v578, %v740
        %v742 = vpop.f32.mrb[0].mxu0
        %743 = vmatprep.mubr.f32.mxu0 0.0
        %744 = vmatmul.mubr.f32.gmra.mrb[0].mxu0 %v612
        %v745 = vpop.f32.mrb[0].mxu0
        %v746 = vadd.f32 %v578, %v745
        %v747 = vpop.f32.mrb[0].mxu0
        %748 = vmatprep.mubr.f32.mxu0 0.0
        %749 = vmatmul.mubr.f32.gmra.mrb[0].mxu0 %v615
        %v750 = vpop.f32.mrb[0].mxu0
        %v751 = vadd.f32 %v578, %v750
        %v752 = vpop.f32.mrb[0].mxu0
        %753 = vmatprep.mubr.f32.mxu0 0.0
        %754 = vmatmul.mubr.f32.gmra.mrb[0].mxu0 %v618
        %v755 = vpop.f32.mrb[0].mxu0
        %v756 = vadd.f32 %v578, %v755
        %v757 = vpop.f32.mrb[0].mxu0
        %758 = vmatprep.mubr.f32.mxu0 0.0
        %759 = vmatmul.mubr.f32.gmra.mrb[0].mxu0 %v621
        %v760 = vpop.f32.mrb[0].mxu0
        %v761 = vadd.f32 %v578, %v760
        %v762 = vpop.f32.mrb[0].mxu0
        %763 = vmatprep.mubr.f32.mxu0 0.0
        %764 = vmatmul.mubr.f32.gmra.mrb[0].mxu0 %v624
        %v765 = vpop.f32.mrb[0].mxu0
        %v766 = vadd.f32 %v578, %v765
        %v767 = vpop.f32.mrb[0].mxu0
        %768 = vmatprep.mubr.f32.mxu0 0.0
        %769 = vmatmul.mubr.f32.gmra.mrb[0].mxu0 %v627
        %v770 = vpop.f32.mrb[0].mxu0
        %v771 = vadd.f32 %v578, %v770
        %v772 = vpop.f32.mrb[0].mxu0
        %773 = vdwg.mxu0
        %vm774 = vcmask 64512
        %775 = vst.msk [vmem:[%s247] sm:$0xff] %vm774, %v696
        %776 = vst.msk [vmem:[%s247 + $0x8] sm:$0xff] %vm774, %v701
        %777 = vst.msk [vmem:[%s247 + $0x10] sm:$0xff] %vm774, %v706
        %778 = vst.msk [vmem:[%s247 + $0x18] sm:$0xff] %vm774, %v711
        %779 = vst.msk [vmem:[%s247 + $0x20] sm:$0xff] %vm774, %v716
        %780 = vst.msk [vmem:[%s247 + $0x28] sm:$0xff] %vm774, %v721
        %781 = vst.msk [vmem:[%s247 + $0x30] sm:$0xff] %vm774, %v726
        %782 = vst.msk [vmem:[%s247 + $0x38] sm:$0xff] %vm774, %v731
        %783 = vst.msk [vmem:[%s247 + $0x40] sm:$0xff] %vm774, %v736
        %784 = vst.msk [vmem:[%s247 + $0x48] sm:$0xff] %vm774, %v741
        %785 = vst.msk [vmem:[%s247 + $0x50] sm:$0xff] %vm774, %v746
        %786 = vst.msk [vmem:[%s247 + $0x58] sm:$0xff] %vm774, %v751
        %787 = vst.msk [vmem:[%s247 + $0x60] sm:$0xff] %vm774, %v756
        %788 = vst.msk [vmem:[%s247 + $0x68] sm:$0xff] %vm774, %v761
        %789 = vst.msk [vmem:[%s247 + $0x70] sm:$0xff] %vm774, %v766
        %790 = vst.msk [vmem:[%s247 + $0x78] sm:$0xff] %vm774, %v771
        %v791 = vsel %vm774, %v696, 0.0
        %v792 = vsel %vm774, %v701, 0.0
        %v793 = vadd.f32 %v791, %v792
        %v794 = vsel %vm774, %v706, 0.0
        %v795 = vadd.f32 %v793, %v794
        %v796 = vsel %vm774, %v711, 0.0
        %v797 = vadd.f32 %v795, %v796
        %v798 = vsel %vm774, %v716, 0.0
        %v799 = vadd.f32 %v797, %v798
        %v800 = vsel %vm774, %v721, 0.0
        %v801 = vadd.f32 %v799, %v800
        %v802 = vsel %vm774, %v726, 0.0
        %v803 = vadd.f32 %v801, %v802
        %v804 = vsel %vm774, %v731, 0.0
        %v805 = vadd.f32 %v803, %v804
        %v806 = vsel %vm774, %v736, 0.0
        %v807 = vadd.f32 %v805, %v806
        %v808 = vsel %vm774, %v741, 0.0
        %v809 = vadd.f32 %v807, %v808
        %v810 = vsel %vm774, %v746, 0.0
        %v811 = vadd.f32 %v809, %v810
        %v812 = vsel %vm774, %v751, 0.0
        %v813 = vadd.f32 %v811, %v812
        %v814 = vsel %vm774, %v756, 0.0
        %v815 = vadd.f32 %v813, %v814
        %v816 = vsel %vm774, %v761, 0.0
        %v817 = vadd.f32 %v815, %v816
        %v818 = vsel %vm774, %v766, 0.0
        %v819 = vadd.f32 %v817, %v818
        %v820 = vsel %vm774, %v771, 0.0
        %v821 = vadd.f32 %v819, %v820
        %v822 = vrot.slane %v821, 4
        %v823 = vadd.f32 %v821, %v822
        %v824 = vrot.slane %v823, 2
        %v825 = vadd.f32 %v823, %v824
        %v826 = vrot.slane %v825, 1
        %v827 = vadd.f32 %v825, %v826
        %v828 = vmul.f32 %v827, 0.0078125
        %v829 = vsub.f32 %v696, %v828
        %v830 = vsub.f32 %v701, %v828
        %v831 = vsub.f32 %v706, %v828
        %v832 = vsub.f32 %v711, %v828
        %v833 = vsub.f32 %v716, %v828
        %v834 = vsub.f32 %v721, %v828
        %v835 = vsub.f32 %v726, %v828
        %v836 = vsub.f32 %v731, %v828
        %v837 = vsub.f32 %v736, %v828
        %v838 = vsub.f32 %v741, %v828
        %v839 = vsub.f32 %v746, %v828
        %v840 = vsub.f32 %v751, %v828
        %v841 = vsub.f32 %v756, %v828
        %v842 = vsub.f32 %v761, %v828
        %v843 = vsub.f32 %v766, %v828
        %v844 = vsub.f32 %v771, %v828
        %v845 = vmul.f32 %v829, %v829
        %v846 = vmul.f32 %v830, %v830
        %v847 = vmul.f32 %v831, %v831
        %v848 = vmul.f32 %v832, %v832
        %v849 = vmul.f32 %v833, %v833
        %v850 = vmul.f32 %v834, %v834
        %v851 = vmul.f32 %v835, %v835
        %v852 = vmul.f32 %v836, %v836
        %v853 = vmul.f32 %v837, %v837
        %v854 = vmul.f32 %v838, %v838
        %v855 = vmul.f32 %v839, %v839
        %v856 = vmul.f32 %v840, %v840
        %v857 = vmul.f32 %v841, %v841
        %v858 = vmul.f32 %v842, %v842
        %v859 = vmul.f32 %v843, %v843
        %v860 = vmul.f32 %v844, %v844
        %v861 = vsel %vm774, %v845, 0.0
        %v862 = vsel %vm774, %v846, 0.0
        %v863 = vadd.f32 %v861, %v862
        %v864 = vsel %vm774, %v847, 0.0
        %v865 = vadd.f32 %v863, %v864
        %v866 = vsel %vm774, %v848, 0.0
        %v867 = vadd.f32 %v865, %v866
        %v868 = vsel %vm774, %v849, 0.0
        %v869 = vadd.f32 %v867, %v868
        %v870 = vsel %vm774, %v850, 0.0
        %v871 = vadd.f32 %v869, %v870
        %v872 = vsel %vm774, %v851, 0.0
        %v873 = vadd.f32 %v871, %v872
        %v874 = vsel %vm774, %v852, 0.0
        %v875 = vadd.f32 %v873, %v874
        %v876 = vsel %vm774, %v853, 0.0
        %v877 = vadd.f32 %v875, %v876
        %v878 = vsel %vm774, %v854, 0.0
        %v879 = vadd.f32 %v877, %v878
        %v880 = vsel %vm774, %v855, 0.0
        %v881 = vadd.f32 %v879, %v880
        %v882 = vsel %vm774, %v856, 0.0
        %v883 = vadd.f32 %v881, %v882
        %v884 = vsel %vm774, %v857, 0.0
        %v885 = vadd.f32 %v883, %v884
        %v886 = vsel %vm774, %v858, 0.0
        %v887 = vadd.f32 %v885, %v886
        %v888 = vsel %vm774, %v859, 0.0
        %v889 = vadd.f32 %v887, %v888
        %v890 = vsel %vm774, %v860, 0.0
        %v891 = vadd.f32 %v889, %v890
        %v892 = vrot.slane %v891, 4
        %v893 = vadd.f32 %v891, %v892
        %v894 = vrot.slane %v893, 2
        %v895 = vadd.f32 %v893, %v894
        %v896 = vrot.slane %v895, 1
        %v897 = vadd.f32 %v895, %v896
        %vm898 = vcmask 1040384
        %v899 = vsel %vm898, %v827, %v897
        %vm900 = vcmask 58368
        %901 = vst.msk [vmem:[%s254] sm:$0x3] %vm900, %v899
        %s902 = sand.u32 %s102, 1
        %s903 = scalar_lea.sflag [#allocation4], %s902
        %s904 = sand.u32 %s102, 1
        %s905 = smul.addr %s904, 128
        %s906 = scalar_lea.vmem [#allocation8], %s905
        %s907 = sand.u32 %s128, 1
        %s908 = scalar_lea.sflag [#allocation10], %s907
        %s909 = sand.u32 %s128, 1
        %s910 = smul.addr %s909, 2
        %s911 = scalar_lea.vmem [#allocation9], %s910
        // Predicated region
        $region45: #{resnet_forward.4} parent=31 // pred_check
          %p912 = pneg %p112
        $region46: #{resnet_forward.4} parent=31 // pred_check_branch
          %914 = sbr.rel (%p912) target = $region48
        $region47: #{resnet_forward.4} parent=31 // pred_region
          %s915 = smul.u32 2, %s26
          %s917 = ssub.s32 2048, 2048
          %918 = vsyncadd %s903, %s917
          %s919 = smul.addr %s915, 8
          %s920 = smul.addr %s919, 128
          %s921 = scalar_lea.hbm %s3, %s920
          %s922 = sshll.u32 %s906, 4
          %s923 = int_to_ptr.vmem [resolvable:$true] %s922
          %928 = dma.vmem_to_hbm [thread:$0]  %s923, 2048, %s921, %s903, 128, 128, 8
        $region48: #{resnet_forward.4} parent=31 // pred_fallthru
          _
        // Predicated region
        $region49: #{resnet_forward.4} parent=31 // pred_check
          %p929 = pneg %p138
        $region50: #{resnet_forward.4} parent=31 // pred_check_branch
          %931 = sbr.rel (%p929) target = $region52
        $region51: #{resnet_forward.4} parent=31 // pred_region
          %s933 = ssub.s32 32, 32
          %934 = vsyncadd %s908, %s933
          %s935 = smul.addr %s26, 32
          %s936 = scalar_lea.hbm %s4, %s935
          %s938 = sshll.u32 %s911, 4
          %s939 = int_to_ptr.vmem [resolvable:$true] %s938
          %941 = dma.vmem_to_hbm [thread:$0]  %s939, 32, %s936, %s908
        $region52: #{resnet_forward.4} parent=31 // pred_fallthru
          _
      $region32: #{resnet_forward.4} parent=5 // pred_fallthru
        _
      %p942 = scmp.le.s32.totalorder 2, %s21
      // Predicated region
      $region53: #{resnet_forward.4} parent=5 // pred_check
        %p943 = pneg %p942
      $region54: #{resnet_forward.4} parent=5 // pred_check_branch
        %945 = sbr.rel (%p943) target = $region56
      $region55: #{resnet_forward.4} parent=5 // pred_region
        %s946 = ssub.s32 %s21, 2
        // Predicated region
        $region57: #{resnet_forward.4} parent=55 // pred_check
          %p947 = pneg %p118
        $region58: #{resnet_forward.4} parent=55 // pred_check_branch
          %949 = sbr.rel (%p947) target = $region60
        $region59: #{resnet_forward.4} parent=55 // pred_region
          %s950 = sand.u32 %s103, 1
          %s951 = scalar_lea.sflag [#allocation4], %s950
          %s952 = sand.u32 %s103, 1
          %s953 = smul.addr %s952, 128
          %s954 = scalar_lea.vmem [#allocation8], %s953
          %955 = dma.done %s951, 2048
        $region60: #{resnet_forward.4} parent=55 // pred_fallthru
          _
        // Predicated region
        $region61: #{resnet_forward.4} parent=55 // pred_check
          %p956 = pneg %p144
        $region62: #{resnet_forward.4} parent=55 // pred_check_branch
          %958 = sbr.rel (%p956) target = $region64
        $region63: #{resnet_forward.4} parent=55 // pred_region
          %s959 = sand.u32 %s129, 1
          %s960 = scalar_lea.sflag [#allocation10], %s959
          %s961 = sand.u32 %s129, 1
          %s962 = smul.addr %s961, 2
          %s963 = scalar_lea.vmem [#allocation9], %s962
          %964 = dma.done %s960, 32
        $region64: #{resnet_forward.4} parent=55 // pred_fallthru
          _
      $region56: #{resnet_forward.4} parent=5 // pred_fallthru
        _
    $region6: #{resnet_forward.4} parent=1 // loop_footer
      %s25 = sadd.s32 1, %s21
    $region7: #{resnet_forward.4} parent=1 // loop_footer_branch
      %20 = sbr.rel target = $region3
    $region8: #{resnet_forward.4} parent=1 // loop_exit
      _
    %965 = vsyncpa [#allocation3], 1
    %s966 = scalar_lea.sflag [#allocation3], 1
    %967 = vsyncpa %s966, 1
    %968 = vsyncpa [#allocation6], 1
    %969 = vsyncpa [#allocation4], 1
    %s970 = scalar_lea.sflag [#allocation4], 1
    %971 = vsyncpa %s970, 1
    %972 = vsyncpa [#allocation10], 1
    %s973 = scalar_lea.sflag [#allocation10], 1
    %974 = vsyncpa %s973, 1

// kernel: tile.23
$region0: #{tile.23}
  #allocation0 [shape = 's32[1]{0}', space=sflag, size = 0x4, scoped, tag = 'scoped memory for tile.23']
  %s0 = inlined_call_operand.vmem [shape: f32[16], index: 0, kind: input, shape index: {}]
  %s1 = inlined_call_operand.vmem [shape: f32[16,16], index: 1, kind: output, shape index: {}]
  // Predicated region
  $region2: #{tile.23} parent=0 // pred_check
    _
  $region3: #{tile.23} parent=0 // pred_check_branch
    %3 = sbr.rel (0) target = $region5
  $region4: #{tile.23} parent=0 // pred_region
    _
  $region5: #{tile.23} parent=0 // pred_fallthru
    _
  %v4 = vld [vmem:[%s0] ss:$0 sm:$0xff]
  %5 = vst [vmem:[%s1] sm:$0xff] %v4
  %s6 = scalar_lea.vmem %s1, 8
  %7 = vst [vmem:[%s6] sm:$0xff] %v4

// kernel: tile.24
$region0: #{tile.24}
  %s0 = inlined_call_operand.vmem [shape: f32[16,16], index: 0, kind: input, shape index: {}]
  %s1 = inlined_call_operand.hbm [shape: f32[1,256], index: 1, kind: output, shape index: {}]
  $region1: #{tile.24} parent=0
    #allocation0 [shape = 'u8[1024]{0}', space=vmem, size = 0x400, scoped, tag = 'operand span for operand 1']
    #allocation1 [shape = 's32[1]{0}', space=sflag, size = 0x4, scoped, tag = 'scoped memory for tile.24']
    #allocation2 [shape = 'u8[8192]{0}', space=vmem, size = 0x2000, scoped, tag = 'scoped mem for output reshape']
    %2 = vsyncpa [#allocation1], 0
    %s3 = smov 3
    %v4 = vld [vmem:[%s0] ss:$8 sm:%s3]
    %vm5 = vcmask 130048
    %6 = vst.msk [vmem:[#allocation2] ss:$8 sm:$0x3] %vm5, %v4
    %s7 = scalar_lea.vmem %s0, 7
    %s8 = smov 3
    %v9 = vld [vmem:[%s7] ss:$8 sm:%s8]
    %10 = vrot.lane.b32.xlu0 %v9, 112
    %v11 = vpop.permute.xlu0 %10
    %vm12 = vcmask 1048448
    %13 = vst.msk [vmem:[#allocation2] ss:$8 sm:$0x3] %vm12, %v11
    %s14 = scalar_lea.vmem %s0, 6
    %s15 = smov 3
    %v16 = vld [vmem:[%s14] ss:$8 sm:%s15]
    %17 = vrot.lane.b32.xlu0 %v16, 96
    %v18 = vpop.permute.xlu0 %17
    %vm19 = vcmask 917248
    %20 = vst.msk [vmem:[#allocation2] ss:$8 sm:$0x3] %vm19, %v18
    %s21 = scalar_lea.vmem %s0, 5
    %s22 = smov 3
    %v23 = vld [vmem:[%s21] ss:$8 sm:%s22]
    %24 = vrot.lane.b32.xlu0 %v23, 80
    %v25 = vpop.permute.xlu0 %24
    %vm26 = vcmask 786048
    %27 = vst.msk [vmem:[#allocation2] ss:$8 sm:$0x3] %vm26, %v25
    %s28 = scalar_lea.vmem %s0, 4
    %s29 = smov 3
    %v30 = vld [vmem:[%s28] ss:$8 sm:%s29]
    %31 = vrot.lane.b32.xlu0 %v30, 64
    %v32 = vpop.permute.xlu0 %31
    %vm33 = vcmask 654848
    %34 = vst.msk [vmem:[#allocation2] ss:$8 sm:$0x3] %vm33, %v32
    %s35 = scalar_lea.vmem %s0, 3
    %s36 = smov 3
    %v37 = vld [vmem:[%s35] ss:$8 sm:%s36]
    %38 = vrot.lane.b32.xlu0 %v37, 48
    %v39 = vpop.permute.xlu0 %38
    %vm40 = vcmask 523648
    %41 = vst.msk [vmem:[#allocation2] ss:$8 sm:$0x3] %vm40, %v39
    %s42 = scalar_lea.vmem %s0, 2
    %s43 = smov 3
    %v44 = vld [vmem:[%s42] ss:$8 sm:%s43]
    %45 = vrot.lane.b32.xlu0 %v44, 32
    %v46 = vpop.permute.xlu0 %45
    %vm47 = vcmask 392448
    %48 = vst.msk [vmem:[#allocation2] ss:$8 sm:$0x3] %vm47, %v46
    %s49 = scalar_lea.vmem %s0, 1
    %s50 = smov 3
    %v51 = vld [vmem:[%s49] ss:$8 sm:%s50]
    %52 = vrot.lane.b32.xlu0 %v51, 16
    %v53 = vpop.permute.xlu0 %52
    %vm54 = vcmask 261248
    %55 = vst.msk [vmem:[#allocation2] ss:$8 sm:$0x3] %vm54, %v53
    %s57 = sshllo.u32 0, 1
    %v59 = vld [vmem:[#allocation2] sm:%s57]
    %s60 = sshllo.u32 0, 1
    %61 = vst [vmem:[#allocation0] sm:%s60] %v59
    %s62 = scalar_lea.vmem [#allocation2], 8
    %v63 = vld [vmem:[%s62] sm:%s57]
    %s64 = sshllo.u32 0, 1
    %s65 = scalar_lea.vmem [#allocation0], 1
    %66 = vst [vmem:[%s65] sm:%s64] %v63
    %s68 = ssub.s32 32, 32
    %69 = vsyncadd [#allocation1], %s68
    %s71 = sshll.u32 [#allocation0], 4
    %s72 = int_to_ptr.vmem [resolvable:$true] %s71
    %74 = dma.vmem_to_hbm [thread:$0]  %s72, 32, %s1, [#allocation1]
    %75 = dma.done [#allocation1], 32
    %76 = vsyncpa [#allocation1], 1

// kernel: resnet_forward.5
$region0: #{resnet_forward.5}
  #allocation0 [shape = 'u32[]', space=smem, size = 0x4, offset = 0x4, fixed_abs, tag = 'smem constant byte address 0x4 - core index']
  #allocation1 [shape = 'u32[144,128]{1,0:T(1,128)}', space=vmem, size = 0x12000, scoped, tag = 'internal scratch']
  %s0 = inlined_call_operand.hbm [shape: f32[8,5,5,32], index: 0, kind: input, shape index: {}]
  %s1 = inlined_call_operand.hbm [shape: f32[128,16], index: 1, kind: input, shape index: {}]
  %s2 = inlined_call_operand.hbm [shape: f32[1,16], index: 2, kind: input, shape index: {}]
  %s3 = inlined_call_operand.hbm [shape: f32[8,16,16], index: 3, kind: output, shape index: {0}]
  %s4 = inlined_call_operand.hbm [shape: f32[4,2,16], index: 4, kind: output, shape index: {1}]
  %5 = xla_tuple %s3, %s4
  %s6 = sld [smem:[#allocation0]]
  $region65: #{resnet_forward.5} parent=0
    _
  %s8 = ssub.s32 1, %s6
  %s9 = scalar_select 0, %s8, %s6
  $region1: #{resnet_forward.5} parent=0
    #allocation2 [shape = 'u8[81920]{0}', space=vmem, size = 0x14000, scoped, tag = 'input window, operand 0']
    #allocation3 [shape = 's32[2]{0}', space=sflag, size = 0x8, scoped, tag = 'scoped memory for resnet_forward.5']
    #allocation4 [shape = 's32[2]{0}', space=sflag, size = 0x8, scoped, tag = 'scoped memory for resnet_forward.5']
    #allocation5 [shape = 'u8[65536]{0}', space=vmem, size = 0x10000, scoped, tag = 'input window, operand 1, single buffered']
    #allocation6 [shape = 's32[1]{0}', space=sflag, size = 0x4, scoped, tag = 'scoped memory for resnet_forward.5']
    #allocation7 [shape = 'u8[512]{0}', space=vmem, size = 0x400, scoped, tag = 'input window, operand 2, single buffered']
    #allocation8 [shape = 'u8[32768]{0}', space=vmem, size = 0x8000, scoped, tag = 'output window, operand 0']
    #allocation9 [shape = 'u8[2048]{0}', space=vmem, size = 0x800, scoped, tag = 'output window, operand 1']
    #allocation10 [shape = 's32[2]{0}', space=sflag, size = 0x8, scoped, tag = 'scoped memory for resnet_forward.5']
    %10 = vsyncpa [#allocation3], 0
    %s11 = scalar_lea.sflag [#allocation3], 1
    %12 = vsyncpa %s11, 0
    %13 = vsyncpa [#allocation6], 0
    %14 = vsyncpa [#allocation4], 0
    %s15 = scalar_lea.sflag [#allocation4], 1
    %16 = vsyncpa %s15, 0
    %17 = vsyncpa [#allocation10], 0
    %s18 = scalar_lea.sflag [#allocation10], 1
    %19 = vsyncpa %s18, 0
    loop: start=0, step=1, limit=6
    $region2: #{resnet_forward.5} parent=1 // loop_pre_header
      _
    $region3: #{resnet_forward.5} parent=1 // loop_header
      %s21 = sphi 0, %s25
      %p22 = scmp.ge.s32.totalorder %s21, 6
      %s31 = sphi 0, %s33
      %s34 = sphi 0, %s31
      %s35 = sphi 0, %s34
      %s51 = sphi 0, %s35
      %s55 = sphi 0, %s55
      %s57 = sphi 0, %s55
      %s58 = sphi 0, %s57
      %s72 = sphi 0, %s58
      %s76 = sphi 0, %s76
      %s78 = sphi 0, %s76
      %s79 = sphi 0, %s78
      %s93 = sphi 0, %s79
      %s99 = sphi 0, %s101
      %s102 = sphi 0, %s99
      %s103 = sphi 0, %s102
      %s119 = sphi 0, %s103
      %s125 = sphi 0, %s127
      %s128 = sphi 0, %s125
      %s129 = sphi 0, %s128
      %s145 = sphi 0, %s129
    $region4: #{resnet_forward.5} parent=1 // loop_header_branch
      %24 = sbr.rel (%p22) target = $region8
    $region5: #{resnet_forward.5} parent=1 // loop_body
      %s26 = ssub.s32 %s21, 1
      %s27 = ssub.s32 %s21, 2
      %s28 = sadd.s32 %s21, 1
      %s29 = ssub.s32 %s21, %s28
      %p30 = scmp.eq.s32.totalorder %s29, 0
      %s32 = sadd.s32 %s31, 1
      %s33 = scalar_select %p30, %s31, %s32
      %p36 = pneg %p30
      %p37 = scmp.eq.s32.totalorder %s21, 3
      %p38 = por %p36, %p37
      %p39 = scmp.ne.s32.totalorder %s31, %s34
      %p40 = scmp.eq.s32.totalorder %s21, 0
      %p41 = por %p39, %p40
      %p42 = scmp.ne.s32.totalorder %s31, %s34
      %p43 = scmp.eq.s32.totalorder %s26, 3
      %p44 = por %p42, %p43
      %p45 = scmp.ne.s32.totalorder %s34, %s35
      %p46 = scmp.eq.s32.totalorder %s26, 0
      %p47 = por %p45, %p46
      %p48 = scmp.ne.s32.totalorder %s34, %s35
      %p49 = scmp.eq.s32.totalorder %s27, 3
      %p50 = por %p48, %p49
      %p52 = scmp.ne.s32.totalorder %s35, %s51
      %p53 = scmp.eq.s32.totalorder %s27, 0
      %p54 = por %p52, %p53
      %s56 = sadd.s32 %s55, 1
      %p59 = scmp.eq.s32.totalorder %s21, 3
      %p60 = scmp.ne.s32.totalorder %s55, %s57
      %p61 = scmp.eq.s32.totalorder %s21, 0
      %p62 = por %p60, %p61
      %p63 = scmp.ne.s32.totalorder %s55, %s57
      %p64 = scmp.eq.s32.totalorder %s26, 3
      %p65 = por %p63, %p64
      %p66 = scmp.ne.s32.totalorder %s57, %s58
      %p67 = scmp.eq.s32.totalorder %s26, 0
      %p68 = por %p66, %p67
      %p69 = scmp.ne.s32.totalorder %s57, %s58
      %p70 = scmp.eq.s32.totalorder %s27, 3
      %p71 = por %p69, %p70
      %p73 = scmp.ne.s32.totalorder %s58, %s72
      %p74 = scmp.eq.s32.totalorder %s27, 0
      %p75 = por %p73, %p74
      %s77 = sadd.s32 %s76, 1
      %p80 = scmp.eq.s32.totalorder %s21, 3
      %p81 = scmp.ne.s32.totalorder %s76, %s78
      %p82 = scmp.eq.s32.totalorder %s21, 0
      %p83 = por %p81, %p82
      %p84 = scmp.ne.s32.totalorder %s76, %s78
      %p85 = scmp.eq.s32.totalorder %s26, 3
      %p86 = por %p84, %p85
      %p87 = scmp.ne.s32.totalorder %s78, %s79
      %p88 = scmp.eq.s32.totalorder %s26, 0
      %p89 = por %p87, %p88
      %p90 = scmp.ne.s32.totalorder %s78, %s79
      %p91 = scmp.eq.s32.totalorder %s27, 3
      %p92 = por %p90, %p91
      %p94 = scmp.ne.s32.totalorder %s79, %s93
      %p95 = scmp.eq.s32.totalorder %s27, 0
      %p96 = por %p94, %p95
      %s97 = ssub.s32 %s21, %s28
      %p98 = scmp.eq.s32.totalorder %s97, 0
      %s100 = sadd.s32 %s99, 1
      %s101 = scalar_select %p98, %s99, %s100
      %p104 = pneg %p98
      %p105 = scmp.eq.s32.totalorder %s21, 3
      %p106 = por %p104, %p105
      %p107 = scmp.ne.s32.totalorder %s99, %s102
      %p108 = scmp.eq.s32.totalorder %s21, 0
      %p109 = por %p107, %p108
      %p110 = scmp.ne.s32.totalorder %s99, %s102
      %p111 = scmp.eq.s32.totalorder %s26, 3
      %p112 = por %p110, %p111
      %p113 = scmp.ne.s32.totalorder %s102, %s103
      %p114 = scmp.eq.s32.totalorder %s26, 0
      %p115 = por %p113, %p114
      %p116 = scmp.ne.s32.totalorder %s102, %s103
      %p117 = scmp.eq.s32.totalorder %s27, 3
      %p118 = por %p116, %p117
      %p120 = scmp.ne.s32.totalorder %s103, %s119
      %p121 = scmp.eq.s32.totalorder %s27, 0
      %p122 = por %p120, %p121
      %s123 = ssub.s32 %s21, %s28
      %p124 = scmp.eq.s32.totalorder %s123, 0
      %s126 = sadd.s32 %s125, 1
      %s127 = scalar_select %p124, %s125, %s126
      %p130 = pneg %p124
      %p131 = scmp.eq.s32.totalorder %s21, 3
      %p132 = por %p130, %p131
      %p133 = scmp.ne.s32.totalorder %s125, %s128
      %p134 = scmp.eq.s32.totalorder %s21, 0
      %p135 = por %p133, %p134
      %p136 = scmp.ne.s32.totalorder %s125, %s128
      %p137 = scmp.eq.s32.totalorder %s26, 3
      %p138 = por %p136, %p137
      %p139 = scmp.ne.s32.totalorder %s128, %s129
      %p140 = scmp.eq.s32.totalorder %s26, 0
      %p141 = por %p139, %p140
      %p142 = scmp.ne.s32.totalorder %s128, %s129
      %p143 = scmp.eq.s32.totalorder %s27, 3
      %p144 = por %p142, %p143
      %p146 = scmp.ne.s32.totalorder %s129, %s145
      %p147 = scmp.eq.s32.totalorder %s27, 0
      %p148 = por %p146, %p147
      %p149 = scmp.le.s32.totalorder 1, %s21
      %p150 = scmp.lt.s32.totalorder %s21, 5
      %p151 = pnand %p149, %p150
      %p152 = pneg %p151
      // Predicated region
      $region9: #{resnet_forward.5} parent=5 // pred_check
        _
      $region10: #{resnet_forward.5} parent=5 // pred_check_branch
        %154 = sbr.rel (%p151) target = $region12
      $region11: #{resnet_forward.5} parent=5 // pred_region
        %s155 = ssub.s32 %s21, 1
        // Predicated region
        $region13: #{resnet_forward.5} parent=11 // pred_check
          %p156 = pneg %p68
        $region14: #{resnet_forward.5} parent=11 // pred_check_branch
          %158 = sbr.rel (%p156) target = $region16
        $region15: #{resnet_forward.5} parent=11 // pred_region
          %s160 = ssub.s32 2048, 2048
          %161 = vsyncadd [#allocation6], %s160
          %s162 = sshll.u32 [#allocation5], 4
          %s163 = int_to_ptr.vmem [resolvable:$true] %s162
          %168 = dma.hbm_to_vmem [thread:$0]  %s1, 2048, %s163, [#allocation6], 128, 128, 8
        $region16: #{resnet_forward.5} parent=11 // pred_fallthru
          _
        // Predicated region
        $region17: #{resnet_forward.5} parent=11 // pred_check
          %p169 = pneg %p89
        $region18: #{resnet_forward.5} parent=11 // pred_check_branch
          %171 = sbr.rel (%p169) target = $region20
        $region19: #{resnet_forward.5} parent=11 // pred_region
          %s173 = ssub.s32 16, 16
          %174 = vsyncadd [#allocation6], %s173
          %s176 = sshll.u32 [#allocation7], 4
          %s177 = int_to_ptr.vmem [resolvable:$true] %s176
          %179 = dma.hbm_to_vmem [thread:$0]  %s2, 16, %s177, [#allocation6]
        $region20: #{resnet_forward.5} parent=11 // pred_fallthru
          _
      $region12: #{resnet_forward.5} parent=5 // pred_fallthru
        _
      %p180 = scmp.lt.s32.totalorder %s21, 4
      // Predicated region
      $region21: #{resnet_forward.5} parent=5 // pred_check
        %p181 = pneg %p180
      $region22: #{resnet_forward.5} parent=5 // pred_check_branch
        %183 = sbr.rel (%p181) target = $region24
      $region23: #{resnet_forward.5} parent=5 // pred_region
        // Predicated region
        $region25: #{resnet_forward.5} parent=23 // pred_check
          %p184 = pneg %p41
        $region26: #{resnet_forward.5} parent=23 // pred_check_branch
          %186 = sbr.rel (%p184) target = $region28
        $region27: #{resnet_forward.5} parent=23 // pred_region
          %s187 = sand.u32 %s31, 1
          %s188 = scalar_lea.sflag [#allocation3], %s187
          %s189 = sand.u32 %s31, 1
          %s190 = smul.addr %s189, 80
          %s191 = scalar_lea.vmem [#allocation2], %s190
          %s192 = smul.u32 2, %s21
          %s194 = ssub.s32 1280, 1280
          %195 = vsyncadd %s188, %s194
          %s196 = smul.addr %s192, 5
          %s197 = smul.addr %s196, 128
          %s198 = scalar_lea.hbm %s0, %s197
          %s199 = sshll.u32 %s191, 4
          %s200 = int_to_ptr.vmem [resolvable:$true] %s199
          %205 = dma.hbm_to_vmem [thread:$0]  %s198, 1280, %s200, %s188, 128, 128, 8
        $region28: #{resnet_forward.5} parent=23 // pred_fallthru
          _
      $region24: #{resnet_forward.5} parent=5 // pred_fallthru
        _
      %p206 = scmp.le.s32.totalorder 1, %s21
      %p207 = scmp.lt.s32.totalorder %s21, 5
      %p208 = pnand %p206, %p207
      %p209 = pneg %p208
      // Predicated region
      $region29: #{resnet_forward.5} parent=5 // pred_check
        _
      $region30: #{resnet_forward.5} parent=5 // pred_check_branch
        %211 = sbr.rel (%p208) target = $region32
      $region31: #{resnet_forward.5} parent=5 // pred_region
        %s212 = ssub.s32 %s21, 1
        %s213 = sand.u32 %s34, 1
        %s214 = scalar_lea.sflag [#allocation3], %s213
        %s215 = sand.u32 %s34, 1
        %s216 = smul.addr %s215, 80
        %s217 = scalar_lea.vmem [#allocation2], %s216
        // Predicated region
        $region33: #{resnet_forward.5} parent=31 // pred_check
          %p218 = pneg %p47
        $region34: #{resnet_forward.5} parent=31 // pred_check_branch
          %220 = sbr.rel (%p218) target = $region36
        $region35: #{resnet_forward.5} parent=31 // pred_region
          %221 = dma.done %s214, 1280
        $region36: #{resnet_forward.5} parent=31 // pred_fallthru
          _
        // Predicated region
        $region37: #{resnet_forward.5} parent=31 // pred_check
          %p222 = pneg %p68
        $region38: #{resnet_forward.5} parent=31 // pred_check_branch
          %224 = sbr.rel (%p222) target = $region40
        $region39: #{resnet_forward.5} parent=31 // pred_region
          %225 = dma.done [#allocation6], 2048
        $region40: #{resnet_forward.5} parent=31 // pred_fallthru
          _
        // Predicated region
        $region41: #{resnet_forward.5} parent=31 // pred_check
          %p226 = pneg %p89
        $region42: #{resnet_forward.5} parent=31 // pred_check_branch
          %228 = sbr.rel (%p226) target = $region44
        $region43: #{resnet_forward.5} parent=31 // pred_region
          %229 = dma.done [#allocation6], 16
        $region44: #{resnet_forward.5} parent=31 // pred_fallthru
          _
        %s230 = sand.u32 %s34, 1
        %s231 = scalar_lea.sflag [#allocation3], %s230
        %s232 = sand.u32 %s34, 1
        %s233 = smul.addr %s232, 80
        %s234 = scalar_lea.vmem [#allocation2], %s233
        %p235 = pneg %p47
        %p236 = pneg %p44
        %p237 = pneg %p68
        %p238 = pneg %p65
        %p239 = pneg %p89
        %p240 = pneg %p86
        %p241 = pneg %p115
        %p242 = pneg %p112
        %s243 = sand.u32 %s102, 1
        %s244 = scalar_lea.sflag [#allocation4], %s243
        %s245 = sand.u32 %s102, 1
        %s246 = smul.addr %s245, 32
        %s247 = scalar_lea.vmem [#allocation8], %s246
        %p248 = pneg %p141
        %p249 = pneg %p138
        %s250 = sand.u32 %s128, 1
        %s251 = scalar_lea.sflag [#allocation10], %s250
        %s252 = sand.u32 %s128, 1
        %s253 = smul.addr %s252, 2
        %s254 = scalar_lea.vmem [#allocation9], %s253
        %s255 = smul.u32 2, %s26
        %s256 = smul.u32 2, %s26
        %v257 = vld [vmem:[%s217] sm:$0xf]
        %v258 = vld [vmem:[%s217 + $0x8] sm:$0xf]
        %v259 = vld [vmem:[%s217 + $0x10] sm:$0xf]
        %v260 = vld [vmem:[%s217 + $0x18] sm:$0xf]
        %v261 = vld [vmem:[%s217 + $0x28] sm:$0xf]
        %v262 = vld [vmem:[%s217 + $0x30] sm:$0xf]
        %v263 = vld [vmem:[%s217 + $0x38] sm:$0xf]
        %v264 = vld [vmem:[%s217 + $0x40] sm:$0xf]
        %v265 = vld [vmem:[%s217 + $0x1] sm:$0xf]
        %v266 = vld [vmem:[%s217 + $0x9] sm:$0xf]
        %v267 = vld [vmem:[%s217 + $0x11] sm:$0xf]
        %v268 = vld [vmem:[%s217 + $0x19] sm:$0xf]
        %v269 = vld [vmem:[%s217 + $0x29] sm:$0xf]
        %v270 = vld [vmem:[%s217 + $0x31] sm:$0xf]
        %v271 = vld [vmem:[%s217 + $0x39] sm:$0xf]
        %v272 = vld [vmem:[%s217 + $0x41] sm:$0xf]
        %s273 = scalar_lea.vmem %s217, 8 [#allocation2]
        %v274 = vld [vmem:[%s273] sm:$0xf]
        %v275 = vld [vmem:[%s273 + $0x8] sm:$0xf]
        %v276 = vld [vmem:[%s273 + $0x10] sm:$0xf]
        %v277 = vld [vmem:[%s273 + $0x18] sm:$0xf]
        %v278 = vld [vmem:[%s273 + $0x28] sm:$0xf]
        %v279 = vld [vmem:[%s273 + $0x30] sm:$0xf]
        %v280 = vld [vmem:[%s273 + $0x38] sm:$0xf]
        %v281 = vld [vmem:[%s273 + $0x40] sm:$0xf]
        %v282 = vld [vmem:[%s273 + $0x1] sm:$0xf]
        %v283 = vld [vmem:[%s273 + $0x9] sm:$0xf]
        %v284 = vld [vmem:[%s273 + $0x11] sm:$0xf]
        %v285 = vld [vmem:[%s273 + $0x19] sm:$0xf]
        %v286 = vld [vmem:[%s273 + $0x29] sm:$0xf]
        %v287 = vld [vmem:[%s273 + $0x31] sm:$0xf]
        %v288 = vld [vmem:[%s273 + $0x39] sm:$0xf]
        %v289 = vld [vmem:[%s273 + $0x41] sm:$0xf]
        %v298 = vcombine.low %v257, %v258
        %v299 = vcombine.low %v259, %v260
        %v300 = vcombine.low %v261, %v262
        %v301 = vcombine.low %v263, %v264
        %v314 = vcombine.low %v265, %v266
        %v315 = vcombine.low %v267, %v268
        %v316 = vcombine.low %v269, %v270
        %v317 = vcombine.low %v271, %v272
        %318 = vrot.lane.b32.xlu0 %v314, 32
        %v319 = vpop.permute.xlu0 %318
        %320 = vrot.lane.b32.xlu0 %v315, 32
        %v321 = vpop.permute.xlu0 %320
        %322 = vrot.lane.b32.xlu0 %v316, 32
        %v323 = vpop.permute.xlu0 %322
        %324 = vrot.lane.b32.xlu0 %v317, 32
        %v325 = vpop.permute.xlu0 %324
        %v338 = vcombine.low %v274, %v275
        %v339 = vcombine.low %v276, %v277
        %v340 = vcombine.low %v278, %v279
        %v341 = vcombine.low %v280, %v281
        %342 = vrot.lane.b32.xlu0 %v338, 64
        %v343 = vpop.permute.xlu0 %342
        %344 = vrot.lane.b32.xlu0 %v339, 64
        %v345 = vpop.permute.xlu0 %344
        %346 = vrot.lane.b32.xlu0 %v340, 64
        %v347 = vpop.permute.xlu0 %346
        %348 = vrot.lane.b32.xlu0 %v341, 64
        %v349 = vpop.permute.xlu0 %348
        %v362 = vcombine.low %v282, %v283
        %v363 = vcombine.low %v284, %v285
        %v364 = vcombine.low %v286, %v287
        %v365 = vcombine.low %v288, %v289
        %366 = vrot.lane.b32.xlu0 %v362, 96
        %v367 = vpop.permute.xlu0 %366
        %368 = vrot.lane.b32.xlu0 %v363, 96
        %v369 = vpop.permute.xlu0 %368
        %370 = vrot.lane.b32.xlu0 %v364, 96
        %v371 = vpop.permute.xlu0 %370
        %372 = vrot.lane.b32.xlu0 %v365, 96
        %v373 = vpop.permute.xlu0 %372
        %vm378 = vcmask 261120
        %v379 = vsel %vm378, %v298, %v319
        %v380 = vsel %vm378, %v299, %v321
        %v381 = vsel %vm378, %v300, %v323
        %v382 = vsel %vm378, %v301, %v325
        %vm383 = vcmask 523264
        %v384 = vsel %vm383, %v379, %v343
        %v385 = vsel %vm383, %v380, %v345
        %v386 = vsel %vm383, %v381, %v347
        %v387 = vsel %vm383, %v382, %v349
        %vm388 = vcmask 785408
        %v389 = vsel %vm388, %v384, %v367
        %v390 = vsel %vm388, %v385, %v369
        %v391 = vsel %vm388, %v386, %v371
        %v392 = vsel %vm388, %v387, %v373
        %v393 = vld [vmem:[#allocation5] sm:$0xff]
        %v394 = vld [vmem:[#allocation5 + $0x8] sm:$0xff]
        %v395 = vld [vmem:[#allocation5 + $0x10] sm:$0xff]
        %v396 = vld [vmem:[#allocation5 + $0x18] sm:$0xff]
        %v397 = vld [vmem:[#allocation5 + $0x20] sm:$0xff]
        %v398 = vld [vmem:[#allocation5 + $0x28] sm:$0xff]
        %v399 = vld [vmem:[#allocation5 + $0x30] sm:$0xff]
        %v400 = vld [vmem:[#allocation5 + $0x38] sm:$0xff]
        %v401 = vld [vmem:[#allocation5 + $0x40] sm:$0xff]
        %v402 = vld [vmem:[#allocation5 + $0x48] sm:$0xff]
        %v403 = vld [vmem:[#allocation5 + $0x50] sm:$0xff]
        %v404 = vld [vmem:[#allocation5 + $0x58] sm:$0xff]
        %v405 = vld [vmem:[#allocation5 + $0x60] sm:$0xff]
        %v406 = vld [vmem:[#allocation5 + $0x68] sm:$0xff]
        %v407 = vld [vmem:[#allocation5 + $0x70] sm:$0xff]
        %v408 = vld [vmem:[#allocation5 + $0x78] sm:$0xff]
        %v409 = vld [vmem:[#allocation7] sm:$0x1]
        %v411 = vlaneseq
        %v412 = vshrl.u32 %v411, 7
        %v413 = vsub.s32 0, %v412
        %v414 = vrot.slane %v409, %v413
        %416 = vmatprep.subr.mxu0 0.0
        %417 = vmatpush1.msra.mxu0 %v393
        %418 = vmatprep.subr.mxu0 0.0
        %419 = vmatpush1.msra.mxu0 %v394
        %420 = vmatprep.subr.mxu0 0.0
        %421 = vmatpush1.msra.mxu0 %v395
        %422 = vmatprep.subr.mxu0 0.0
        %423 = vmatpush1.msra.mxu0 %v396
        %424 = vmatprep.subr.mxu0 0.0
        %425 = vmatpush1.msra.mxu0 %v397
        %426 = vmatprep.subr.mxu0 0.0
        %427 = vmatpush1.msra.mxu0 %v398
        %428 = vmatprep.subr.mxu0 0.0
        %429 = vmatpush1.msra.mxu0 %v399
        %430 = vmatprep.subr.mxu0 0.0
        %431 = vmatpush1.msra.mxu0 %v400
        %432 = vmatprep.subr.mxu0 0.0
        %433 = vmatpush1.msra.mxu0 %v401
        %434 = vmatprep.subr.mxu0 0.0
        %435 = vmatpush1.msra.mxu0 %v402
        %436 = vmatprep.subr.mxu0 0.0
        %437 = vmatpush1.msra.mxu0 %v403
        %438 = vmatprep.subr.mxu0 0.0
        %439 = vmatpush1.msra.mxu0 %v404
        %440 = vmatprep.subr.mxu0 0.0
        %441 = vmatpush1.msra.mxu0 %v405
        %442 = vmatprep.subr.mxu0 0.0
        %443 = vmatpush1.msra.mxu0 %v406
        %444 = vmatprep.subr.mxu0 0.0
        %445 = vmatpush1.msra.mxu0 %v407
        %446 = vmatprep.subr.mxu0 0.0
        %447 = vmatpush1.msra.mxu0 %v408
        %448 = vmatprep.subr.mxu0 0.0
        %449 = vmatpush1.msra.mxu0 0.0
        %450 = vmatprep.subr.mxu0 0.0
        %451 = vmatpush1.msra.mxu0 0.0
        %452 = vmatprep.subr.mxu0 0.0
        %453 = vmatpush1.msra.mxu0 0.0
        %454 = vmatprep.subr.mxu0 0.0
        %455 = vmatpush1.msra.mxu0 0.0
        %456 = vmatprep.subr.mxu0 0.0
        %457 = vmatpush1.msra.mxu0 0.0
        %458 = vmatprep.subr.mxu0 0.0
        %459 = vmatpush1.msra.mxu0 0.0
        %460 = vmatprep.subr.mxu0 0.0
        %461 = vmatpush1.msra.mxu0 0.0
        %462 = vmatprep.subr.mxu0 0.0
        %463 = vmatpush1.msra.mxu0 0.0
        %464 = vmatprep.subr.mxu0 0.0
        %465 = vmatpush1.msra.mxu0 0.0
        %466 = vmatprep.subr.mxu0 0.0
        %467 = vmatpush1.msra.mxu0 0.0
        %468 = vmatprep.subr.mxu0 0.0
        %469 = vmatpush1.msra.mxu0 0.0
        %470 = vmatprep.subr.mxu0 0.0
        %471 = vmatpush1.msra.mxu0 0.0
        %472 = vmatprep.subr.mxu0 0.0
        %473 = vmatpush1.msra.mxu0 0.0
        %474 = vmatprep.subr.mxu0 0.0
        %475 = vmatpush1.msra.mxu0 0.0
        %476 = vmatprep.subr.mxu0 0.0
        %477 = vmatpush1.msra.mxu0 0.0
        %478 = vmatprep.subr.mxu0 0.0
        %479 = vmatpush1.msra.mxu0 0.0
        %480 = vmatprep.mubr.f32.mxu0 0.0
        %481 = vmatmul.mubr.f32.gmra.mrb[0].mxu0 %v389
        %v482 = vpop.f32.mrb[0].mxu0
        %v483 = vadd.f32 %v414, %v482
        %v484 = vpop.f32.mrb[0].mxu0
        %485 = vmatprep.mubr.f32.mxu0 0.0
        %486 = vmatmul.mubr.f32.gmra.mrb[0].mxu0 %v390
        %v487 = vpop.f32.mrb[0].mxu0
        %v488 = vadd.f32 %v414, %v487
        %v489 = vpop.f32.mrb[0].mxu0
        %490 = vmatprep.mubr.f32.mxu0 0.0
        %491 = vmatmul.mubr.f32.gmra.mrb[0].mxu0 %v391
        %v492 = vpop.f32.mrb[0].mxu0
        %v493 = vadd.f32 %v414, %v492
        %v494 = vpop.f32.mrb[0].mxu0
        %495 = vmatprep.mubr.f32.mxu0 0.0
        %496 = vmatmul.mubr.f32.gmra.mrb[0].mxu0 %v392
        %v497 = vpop.f32.mrb[0].mxu0
        %v498 = vadd.f32 %v414, %v497
        %v499 = vpop.f32.mrb[0].mxu0
        %500 = vdwg.mxu0
        %vm501 = vcmask 130048
        %502 = vst.msk [vmem:[%s247] sm:$0xff] %vm501, %v483
        %503 = vst.msk [vmem:[%s247 + $0x8] sm:$0xff] %vm501, %v488
        %504 = vst.msk [vmem:[%s247 + $0x10] sm:$0xff] %vm501, %v493
        %505 = vst.msk [vmem:[%s247 + $0x18] sm:$0xff] %vm501, %v498
        %v506 = vsel %vm501, %v483, 0.0
        %v507 = vsel %vm501, %v488, 0.0
        %v508 = vadd.f32 %v506, %v507
        %v509 = vsel %vm501, %v493, 0.0
        %v510 = vadd.f32 %v508, %v509
        %v511 = vsel %vm501, %v498, 0.0
        %v512 = vadd.f32 %v510, %v511
        %v513 = vrot.slane %v512, 4
        %v514 = vadd.f32 %v512, %v513
        %v515 = vrot.slane %v514, 2
        %v516 = vadd.f32 %v514, %v515
        %v517 = vrot.slane %v516, 1
        %v518 = vadd.f32 %v516, %v517
        %v519 = vmul.f32 %v518, 0.03125
        %v520 = vsub.f32 %v483, %v519
        %v521 = vsub.f32 %v488, %v519
        %v522 = vsub.f32 %v493, %v519
        %v523 = vsub.f32 %v498, %v519
        %v524 = vmul.f32 %v520, %v520
        %v525 = vmul.f32 %v521, %v521
        %v526 = vmul.f32 %v522, %v522
        %v527 = vmul.f32 %v523, %v523
        %v528 = vsel %vm501, %v524, 0.0
        %v529 = vsel %vm501, %v525, 0.0
        %v530 = vadd.f32 %v528, %v529
        %v531 = vsel %vm501, %v526, 0.0
        %v532 = vadd.f32 %v530, %v531
        %v533 = vsel %vm501, %v527, 0.0
        %v534 = vadd.f32 %v532, %v533
        %v535 = vrot.slane %v534, 4
        %v536 = vadd.f32 %v534, %v535
        %v537 = vrot.slane %v536, 2
        %v538 = vadd.f32 %v536, %v537
        %v539 = vrot.slane %v538, 1
        %v540 = vadd.f32 %v538, %v539
        %vm541 = vcmask 1040384
        %v542 = vsel %vm541, %v518, %v540
        %vm543 = vcmask 123904
        %544 = vst.msk [vmem:[%s254] sm:$0x3] %vm543, %v542
        %s545 = sand.u32 %s102, 1
        %s546 = scalar_lea.sflag [#allocation4], %s545
        %s547 = sand.u32 %s102, 1
        %s548 = smul.addr %s547, 32
        %s549 = scalar_lea.vmem [#allocation8], %s548
        %s550 = sand.u32 %s128, 1
        %s551 = scalar_lea.sflag [#allocation10], %s550
        %s552 = sand.u32 %s128, 1
        %s553 = smul.addr %s552, 2
        %s554 = scalar_lea.vmem [#allocation9], %s553
        // Predicated region
        $region45: #{resnet_forward.5} parent=31 // pred_check
          %p555 = pneg %p112
        $region46: #{resnet_forward.5} parent=31 // pred_check_branch
          %557 = sbr.rel (%p555) target = $region48
        $region47: #{resnet_forward.5} parent=31 // pred_region
          %s558 = smul.u32 2, %s26
          %s560 = ssub.s32 512, 512
          %561 = vsyncadd %s546, %s560
          %s562 = smul.addr %s558, 2
          %s563 = smul.addr %s562, 128
          %s564 = scalar_lea.hbm %s3, %s563
          %s565 = sshll.u32 %s549, 4
          %s566 = int_to_ptr.vmem [resolvable:$true] %s565
          %571 = dma.vmem_to_hbm [thread:$0]  %s566, 512, %s564, %s546, 128, 128, 8
        $region48: #{resnet_forward.5} parent=31 // pred_fallthru
          _
        // Predicated region
        $region49: #{resnet_forward.5} parent=31 // pred_check
          %p572 = pneg %p138
        $region50: #{resnet_forward.5} parent=31 // pred_check_branch
          %574 = sbr.rel (%p572) target = $region52
        $region51: #{resnet_forward.5} parent=31 // pred_region
          %s576 = ssub.s32 32, 32
          %577 = vsyncadd %s551, %s576
          %s578 = smul.addr %s26, 32
          %s579 = scalar_lea.hbm %s4, %s578
          %s581 = sshll.u32 %s554, 4
          %s582 = int_to_ptr.vmem [resolvable:$true] %s581
          %584 = dma.vmem_to_hbm [thread:$0]  %s582, 32, %s579, %s551
        $region52: #{resnet_forward.5} parent=31 // pred_fallthru
          _
      $region32: #{resnet_forward.5} parent=5 // pred_fallthru
        _
      %p585 = scmp.le.s32.totalorder 2, %s21
      // Predicated region
      $region53: #{resnet_forward.5} parent=5 // pred_check
        %p586 = pneg %p585
      $region54: #{resnet_forward.5} parent=5 // pred_check_branch
        %588 = sbr.rel (%p586) target = $region56
      $region55: #{resnet_forward.5} parent=5 // pred_region
        %s589 = ssub.s32 %s21, 2
        // Predicated region
        $region57: #{resnet_forward.5} parent=55 // pred_check
          %p590 = pneg %p118
        $region58: #{resnet_forward.5} parent=55 // pred_check_branch
          %592 = sbr.rel (%p590) target = $region60
        $region59: #{resnet_forward.5} parent=55 // pred_region
          %s593 = sand.u32 %s103, 1
          %s594 = scalar_lea.sflag [#allocation4], %s593
          %s595 = sand.u32 %s103, 1
          %s596 = smul.addr %s595, 32
          %s597 = scalar_lea.vmem [#allocation8], %s596
          %598 = dma.done %s594, 512
        $region60: #{resnet_forward.5} parent=55 // pred_fallthru
          _
        // Predicated region
        $region61: #{resnet_forward.5} parent=55 // pred_check
          %p599 = pneg %p144
        $region62: #{resnet_forward.5} parent=55 // pred_check_branch
          %601 = sbr.rel (%p599) target = $region64
        $region63: #{resnet_forward.5} parent=55 // pred_region
          %s602 = sand.u32 %s129, 1
          %s603 = scalar_lea.sflag [#allocation10], %s602
          %s604 = sand.u32 %s129, 1
          %s605 = smul.addr %s604, 2
          %s606 = scalar_lea.vmem [#allocation9], %s605
          %607 = dma.done %s603, 32
        $region64: #{resnet_forward.5} parent=55 // pred_fallthru
          _
      $region56: #{resnet_forward.5} parent=5 // pred_fallthru
        _
    $region6: #{resnet_forward.5} parent=1 // loop_footer
      %s25 = sadd.s32 1, %s21
    $region7: #{resnet_forward.5} parent=1 // loop_footer_branch
      %20 = sbr.rel target = $region3
    $region8: #{resnet_forward.5} parent=1 // loop_exit
      _
    %608 = vsyncpa [#allocation3], 1
    %s609 = scalar_lea.sflag [#allocation3], 1
    %610 = vsyncpa %s609, 1
    %611 = vsyncpa [#allocation6], 1
    %612 = vsyncpa [#allocation4], 1
    %s613 = scalar_lea.sflag [#allocation4], 1
    %614 = vsyncpa %s613, 1
    %615 = vsyncpa [#allocation10], 1
    %s616 = scalar_lea.sflag [#allocation10], 1
    %617 = vsyncpa %s616, 1

// kernel: resnet_forward.7
$region0: #{resnet_forward.7}
  #allocation0 [shape = 'u32[]', space=smem, size = 0x4, offset = 0x4, fixed_abs, tag = 'smem constant byte address 0x4 - core index']
  #allocation1 [shape = 'u32[144,128]{1,0:T(1,128)}', space=vmem, size = 0x12000, scoped, tag = 'internal scratch']
  %s0 = inlined_call_operand.hbm [shape: f32[8,256], index: 0, kind: input, shape index: {}]
  %s1 = inlined_call_operand.hbm [shape: f32[8,256], index: 1, kind: input, shape index: {}]
  %s2 = inlined_call_operand.hbm [shape: f32[1,256], index: 2, kind: input, shape index: {}]
  %s3 = inlined_call_operand.hbm [shape: f32[1,256], index: 3, kind: input, shape index: {}]
  %s4 = inlined_call_operand.hbm [shape: f32[1,256], index: 4, kind: input, shape index: {}]
  %s5 = inlined_call_operand.hbm [shape: f32[1,256], index: 5, kind: input, shape index: {}]
  %s6 = inlined_call_operand.hbm [shape: f32[8,256], index: 6, kind: output, shape index: {}]
  %s7 = sld [smem:[#allocation0]]
  $region58: #{resnet_forward.7} parent=0
    _
  %s9 = ssub.s32 1, %s7
  %s10 = scalar_select 0, %s9, %s7
  $region1: #{resnet_forward.7} parent=0
    #allocation2 [shape = 'u8[8192]{0}', space=vmem, size = 0x2000, scoped, tag = 'input window, operand 0, single buffered']
    #allocation3 [shape = 's32[1]{0}', space=sflag, size = 0x4, scoped, tag = 'scoped memory for resnet_forward.7']
    #allocation4 [shape = 's32[1]{0}', space=sflag, size = 0x4, scoped, tag = 'scoped memory for resnet_forward.7']
    #allocation5 [shape = 'u8[8192]{0}', space=vmem, size = 0x2000, scoped, tag = 'input window, operand 1, single buffered']
    #allocation6 [shape = 's32[1]{0}', space=sflag, size = 0x4, scoped, tag = 'scoped memory for resnet_forward.7']
    #allocation7 [shape = 'u8[1024]{0}', space=vmem, size = 0x400, scoped, tag = 'input window, operand 2, single buffered']
    #allocation8 [shape = 'u8[1024]{0}', space=vmem, size = 0x400, scoped, tag = 'input window, operand 3, single buffered']
    #allocation9 [shape = 's32[1]{0}', space=sflag, size = 0x4, scoped, tag = 'scoped memory for resnet_forward.7']
    #allocation10 [shape = 'u8[1024]{0}', space=vmem, size = 0x400, scoped, tag = 'input window, operand 4, single buffered']
    #allocation11 [shape = 'u8[1024]{0}', space=vmem, size = 0x400, scoped, tag = 'input window, operand 5, single buffered']
    #allocation12 [shape = 's32[1]{0}', space=sflag, size = 0x4, scoped, tag = 'scoped memory for resnet_forward.7']
    #allocation13 [shape = 'u8[8192]{0}', space=vmem, size = 0x2000, scoped, tag = 'output window, operand 0, single buffered']
    %11 = vsyncpa [#allocation3], 0
    %12 = vsyncpa [#allocation6], 0
    %13 = vsyncpa [#allocation9], 0
    %14 = vsyncpa [#allocation12], 0
    %15 = vsyncpa [#allocation4], 0
    // Predicated region
    $region2: #{resnet_forward.7} parent=1 // pred_check
      _
    $region3: #{resnet_forward.7} parent=1 // pred_check_branch
      %17 = sbr.rel (0) target = $region5
    $region4: #{resnet_forward.7} parent=1 // pred_region
      %s19 = ssub.s32 256, 256
      %20 = vsyncadd [#allocation3], %s19
      %s22 = sshll.u32 [#allocation2], 4
      %s23 = int_to_ptr.vmem [resolvable:$true] %s22
      %25 = dma.hbm_to_vmem [thread:$0]  %s0, 256, %s23, [#allocation3]
    $region5: #{resnet_forward.7} parent=1 // pred_fallthru
      _
    // Predicated region
    $region6: #{resnet_forward.7} parent=1 // pred_check
      _
    $region7: #{resnet_forward.7} parent=1 // pred_check_branch
      %27 = sbr.rel (0) target = $region9
    $region8: #{resnet_forward.7} parent=1 // pred_region
      %s29 = ssub.s32 256, 256
      %30 = vsyncadd [#allocation6], %s29
      %s32 = sshll.u32 [#allocation5], 4
      %s33 = int_to_ptr.vmem [resolvable:$true] %s32
      %35 = dma.hbm_to_vmem [thread:$0]  %s1, 256, %s33, [#allocation6]
    $region9: #{resnet_forward.7} parent=1 // pred_fallthru
      _
    // Predicated region
    $region10: #{resnet_forward.7} parent=1 // pred_check
      _
    $region11: #{resnet_forward.7} parent=1 // pred_check_branch
      %37 = sbr.rel (0) target = $region13
    $region12: #{resnet_forward.7} parent=1 // pred_region
      %s39 = ssub.s32 32, 32
      %40 = vsyncadd [#allocation6], %s39
      %s42 = sshll.u32 [#allocation7], 4
      %s43 = int_to_ptr.vmem [resolvable:$true] %s42
      %45 = dma.hbm_to_vmem [thread:$0]  %s2, 32, %s43, [#allocation6]
    $region13: #{resnet_forward.7} parent=1 // pred_fallthru
      _
    // Predicated region
    $region14: #{resnet_forward.7} parent=1 // pred_check
      _
    $region15: #{resnet_forward.7} parent=1 // pred_check_branch
      %47 = sbr.rel (0) target = $region17
    $region16: #{resnet_forward.7} parent=1 // pred_region
      %s49 = ssub.s32 32, 32
      %50 = vsyncadd [#allocation9], %s49
      %s52 = sshll.u32 [#allocation8], 4
      %s53 = int_to_ptr.vmem [resolvable:$true] %s52
      %55 = dma.hbm_to_vmem [thread:$0]  %s3, 32, %s53, [#allocation9]
    $region17: #{resnet_forward.7} parent=1 // pred_fallthru
      _
    // Predicated region
    $region18: #{resnet_forward.7} parent=1 // pred_check
      _
    $region19: #{resnet_forward.7} parent=1 // pred_check_branch
      %57 = sbr.rel (0) target = $region21
    $region20: #{resnet_forward.7} parent=1 // pred_region
      %s59 = ssub.s32 32, 32
      %60 = vsyncadd [#allocation9], %s59
      %s62 = sshll.u32 [#allocation10], 4
      %s63 = int_to_ptr.vmem [resolvable:$true] %s62
      %65 = dma.hbm_to_vmem [thread:$0]  %s4, 32, %s63, [#allocation9]
    $region21: #{resnet_forward.7} parent=1 // pred_fallthru
      _
    // Predicated region
    $region22: #{resnet_forward.7} parent=1 // pred_check
      _
    $region23: #{resnet_forward.7} parent=1 // pred_check_branch
      %67 = sbr.rel (0) target = $region25
    $region24: #{resnet_forward.7} parent=1 // pred_region
      %s69 = ssub.s32 32, 32
      %70 = vsyncadd [#allocation12], %s69
      %s72 = sshll.u32 [#allocation11], 4
      %s73 = int_to_ptr.vmem [resolvable:$true] %s72
      %75 = dma.hbm_to_vmem [thread:$0]  %s5, 32, %s73, [#allocation12]
    $region25: #{resnet_forward.7} parent=1 // pred_fallthru
      _
    // Predicated region
    $region26: #{resnet_forward.7} parent=1 // pred_check
      _
    $region27: #{resnet_forward.7} parent=1 // pred_check_branch
      %77 = sbr.rel (0) target = $region29
    $region28: #{resnet_forward.7} parent=1 // pred_region
      %78 = dma.done [#allocation3], 256
    $region29: #{resnet_forward.7} parent=1 // pred_fallthru
      _
    // Predicated region
    $region30: #{resnet_forward.7} parent=1 // pred_check
      _
    $region31: #{resnet_forward.7} parent=1 // pred_check_branch
      %80 = sbr.rel (0) target = $region33
    $region32: #{resnet_forward.7} parent=1 // pred_region
      %81 = dma.done [#allocation6], 256
    $region33: #{resnet_forward.7} parent=1 // pred_fallthru
      _
    // Predicated region
    $region34: #{resnet_forward.7} parent=1 // pred_check
      _
    $region35: #{resnet_forward.7} parent=1 // pred_check_branch
      %83 = sbr.rel (0) target = $region37
    $region36: #{resnet_forward.7} parent=1 // pred_region
      %84 = dma.done [#allocation6], 32
    $region37: #{resnet_forward.7} parent=1 // pred_fallthru
      _
    // Predicated region
    $region38: #{resnet_forward.7} parent=1 // pred_check
      _
    $region39: #{resnet_forward.7} parent=1 // pred_check_branch
      %86 = sbr.rel (0) target = $region41
    $region40: #{resnet_forward.7} parent=1 // pred_region
      %87 = dma.done [#allocation9], 32
    $region41: #{resnet_forward.7} parent=1 // pred_fallthru
      _
    // Predicated region
    $region42: #{resnet_forward.7} parent=1 // pred_check
      _
    $region43: #{resnet_forward.7} parent=1 // pred_check_branch
      %89 = sbr.rel (0) target = $region45
    $region44: #{resnet_forward.7} parent=1 // pred_region
      %90 = dma.done [#allocation9], 32
    $region45: #{resnet_forward.7} parent=1 // pred_fallthru
      _
    // Predicated region
    $region46: #{resnet_forward.7} parent=1 // pred_check
      _
    $region47: #{resnet_forward.7} parent=1 // pred_check_branch
      %92 = sbr.rel (0) target = $region49
    $region48: #{resnet_forward.7} parent=1 // pred_region
      %93 = dma.done [#allocation12], 32
    $region49: #{resnet_forward.7} parent=1 // pred_fallthru
      _
    %v94 = vld [vmem:[#allocation2] sm:$0xff]
    %v95 = vld [vmem:[#allocation2 + $0x8] sm:$0xff]
    %v96 = vld [vmem:[#allocation7] sm:$0x3]
    %v98 = vlaneseq
    %v99 = vshrl.u32 %v98, 7
    %v100 = vsub.s32 0, %v99
    %v101 = vrot.slane %v96, %v100
    %v102 = vlaneseq
    %v103 = vshrl.u32 %v102, 7
    %v104 = vsub.s32 1, %v103
    %v105 = vrot.slane %v96, %v104
    %v108 = vmul.f32 %v94, %v101
    %v109 = vmul.f32 %v95, %v105
    %v110 = vld [vmem:[#allocation8] sm:$0x3]
    %v112 = vlaneseq
    %v113 = vshrl.u32 %v112, 7
    %v114 = vsub.s32 0, %v113
    %v115 = vrot.slane %v110, %v114
    %v116 = vlaneseq
    %v117 = vshrl.u32 %v116, 7
    %v118 = vsub.s32 1, %v117
    %v119 = vrot.slane %v110, %v118
    %v122 = vadd.f32 %v108, %v115
    %v123 = vadd.f32 %v109, %v119
    %v124 = vmax.f32 %v122, 0.0
    %v125 = vmax.f32 %v123, 0.0
    %v126 = vld [vmem:[#allocation5] sm:$0xff]
    %v127 = vld [vmem:[#allocation5 + $0x8] sm:$0xff]
    %v128 = vld [vmem:[#allocation10] sm:$0x3]
    %v130 = vlaneseq
    %v131 = vshrl.u32 %v130, 7
    %v132 = vsub.s32 0, %v131
    %v133 = vrot.slane %v128, %v132
    %v134 = vlaneseq
    %v135 = vshrl.u32 %v134, 7
    %v136 = vsub.s32 1, %v135
    %v137 = vrot.slane %v128, %v136
    %v140 = vmul.f32 %v126, %v133
    %v141 = vmul.f32 %v127, %v137
    %v142 = vld [vmem:[#allocation11] sm:$0x3]
    %v144 = vlaneseq
    %v145 = vshrl.u32 %v144, 7
    %v146 = vsub.s32 0, %v145
    %v147 = vrot.slane %v142, %v146
    %v148 = vlaneseq
    %v149 = vshrl.u32 %v148, 7
    %v150 = vsub.s32 1, %v149
    %v151 = vrot.slane %v142, %v150
    %v154 = vadd.f32 %v140, %v147
    %v155 = vadd.f32 %v141, %v151
    %v156 = vmax.f32 %v154, 0.0
    %v157 = vmax.f32 %v155, 0.0
    %v158 = vadd.f32 %v124, %v156
    %v159 = vadd.f32 %v125, %v157
    %160 = vst [vmem:[#allocation13] sm:$0xff] %v158
    %161 = vst [vmem:[#allocation13 + $0x8] sm:$0xff] %v159
    // Predicated region
    $region50: #{resnet_forward.7} parent=1 // pred_check
      _
    $region51: #{resnet_forward.7} parent=1 // pred_check_branch
      %163 = sbr.rel (0) target = $region53
    $region52: #{resnet_forward.7} parent=1 // pred_region
      %s165 = ssub.s32 256, 256
      %166 = vsyncadd [#allocation4], %s165
      %s168 = sshll.u32 [#allocation13], 4
      %s169 = int_to_ptr.vmem [resolvable:$true] %s168
      %171 = dma.vmem_to_hbm [thread:$0]  %s169, 256, %s6, [#allocation4]
    $region53: #{resnet_forward.7} parent=1 // pred_fallthru
      _
    // Predicated region
    $region54: #{resnet_forward.7} parent=1 // pred_check
      _
    $region55: #{resnet_forward.7} parent=1 // pred_check_branch
      %173 = sbr.rel (0) target = $region57
    $region56: #{resnet_forward.7} parent=1 // pred_region
      %174 = dma.done [#allocation4], 256
    $region57: #{resnet_forward.7} parent=1 // pred_fallthru
      _
    %175 = vsyncpa [#allocation3], 1
    %176 = vsyncpa [#allocation6], 1
    %177 = vsyncpa [#allocation9], 1
    %178 = vsyncpa [#allocation12], 1
    %179 = vsyncpa [#allocation4], 1

// kernel: resnet_forward.6
$region0: #{resnet_forward.6}
  #allocation0 [shape = 'u32[]', space=smem, size = 0x4, offset = 0x4, fixed_abs, tag = 'smem constant byte address 0x4 - core index']
  #allocation1 [shape = 'u32[144,128]{1,0:T(1,128)}', space=vmem, size = 0x12000, scoped, tag = 'internal scratch']
  %s0 = inlined_call_operand.hbm [shape: f32[8,5,5,64], index: 0, kind: input, shape index: {}]
  %s1 = inlined_call_operand.hbm [shape: f32[256,16], index: 1, kind: input, shape index: {}]
  %s2 = inlined_call_operand.hbm [shape: f32[1,16], index: 2, kind: input, shape index: {}]
  %s3 = inlined_call_operand.hbm [shape: f32[8,16,16], index: 3, kind: output, shape index: {0}]
  %s4 = inlined_call_operand.hbm [shape: f32[4,2,16], index: 4, kind: output, shape index: {1}]
  %5 = xla_tuple %s3, %s4
  %s6 = sld [smem:[#allocation0]]
  $region65: #{resnet_forward.6} parent=0
    _
  %s8 = ssub.s32 1, %s6
  %s9 = scalar_select 0, %s8, %s6
  $region1: #{resnet_forward.6} parent=0
    #allocation2 [shape = 'u8[81920]{0}', space=vmem, size = 0x14000, scoped, tag = 'input window, operand 0']
    #allocation3 [shape = 's32[2]{0}', space=sflag, size = 0x8, scoped, tag = 'scoped memory for resnet_forward.6']
    #allocation4 [shape = 's32[2]{0}', space=sflag, size = 0x8, scoped, tag = 'scoped memory for resnet_forward.6']
    #allocation5 [shape = 'u8[131072]{0}', space=vmem, size = 0x20000, scoped, tag = 'input window, operand 1, single buffered']
    #allocation6 [shape = 's32[1]{0}', space=sflag, size = 0x4, scoped, tag = 'scoped memory for resnet_forward.6']
    #allocation7 [shape = 'u8[512]{0}', space=vmem, size = 0x400, scoped, tag = 'input window, operand 2, single buffered']
    #allocation8 [shape = 'u8[32768]{0}', space=vmem, size = 0x8000, scoped, tag = 'output window, operand 0']
    #allocation9 [shape = 'u8[2048]{0}', space=vmem, size = 0x800, scoped, tag = 'output window, operand 1']
    #allocation10 [shape = 's32[2]{0}', space=sflag, size = 0x8, scoped, tag = 'scoped memory for resnet_forward.6']
    %10 = vsyncpa [#allocation3], 0
    %s11 = scalar_lea.sflag [#allocation3], 1
    %12 = vsyncpa %s11, 0
    %13 = vsyncpa [#allocation6], 0
    %14 = vsyncpa [#allocation4], 0
    %s15 = scalar_lea.sflag [#allocation4], 1
    %16 = vsyncpa %s15, 0
    %17 = vsyncpa [#allocation10], 0
    %s18 = scalar_lea.sflag [#allocation10], 1
    %19 = vsyncpa %s18, 0
    loop: start=0, step=1, limit=6
    $region2: #{resnet_forward.6} parent=1 // loop_pre_header
      _
    $region3: #{resnet_forward.6} parent=1 // loop_header
      %s21 = sphi 0, %s25
      %p22 = scmp.ge.s32.totalorder %s21, 6
      %s31 = sphi 0, %s33
      %s34 = sphi 0, %s31
      %s35 = sphi 0, %s34
      %s51 = sphi 0, %s35
      %s55 = sphi 0, %s55
      %s57 = sphi 0, %s55
      %s58 = sphi 0, %s57
      %s72 = sphi 0, %s58
      %s76 = sphi 0, %s76
      %s78 = sphi 0, %s76
      %s79 = sphi 0, %s78
      %s93 = sphi 0, %s79
      %s99 = sphi 0, %s101
      %s102 = sphi 0, %s99
      %s103 = sphi 0, %s102
      %s119 = sphi 0, %s103
      %s125 = sphi 0, %s127
      %s128 = sphi 0, %s125
      %s129 = sphi 0, %s128
      %s145 = sphi 0, %s129
    $region4: #{resnet_forward.6} parent=1 // loop_header_branch
      %24 = sbr.rel (%p22) target = $region8
    $region5: #{resnet_forward.6} parent=1 // loop_body
      %s26 = ssub.s32 %s21, 1
      %s27 = ssub.s32 %s21, 2
      %s28 = sadd.s32 %s21, 1
      %s29 = ssub.s32 %s21, %s28
      %p30 = scmp.eq.s32.totalorder %s29, 0
      %s32 = sadd.s32 %s31, 1
      %s33 = scalar_select %p30, %s31, %s32
      %p36 = pneg %p30
      %p37 = scmp.eq.s32.totalorder %s21, 3
      %p38 = por %p36, %p37
      %p39 = scmp.ne.s32.totalorder %s31, %s34
      %p40 = scmp.eq.s32.totalorder %s21, 0
      %p41 = por %p39, %p40
      %p42 = scmp.ne.s32.totalorder %s31, %s34
      %p43 = scmp.eq.s32.totalorder %s26, 3
      %p44 = por %p42, %p43
      %p45 = scmp.ne.s32.totalorder %s34, %s35
      %p46 = scmp.eq.s32.totalorder %s26, 0
      %p47 = por %p45, %p46
      %p48 = scmp.ne.s32.totalorder %s34, %s35
      %p49 = scmp.eq.s32.totalorder %s27, 3
      %p50 = por %p48, %p49
      %p52 = scmp.ne.s32.totalorder %s35, %s51
      %p53 = scmp.eq.s32.totalorder %s27, 0
      %p54 = por %p52, %p53
      %s56 = sadd.s32 %s55, 1
      %p59 = scmp.eq.s32.totalorder %s21, 3
      %p60 = scmp.ne.s32.totalorder %s55, %s57
      %p61 = scmp.eq.s32.totalorder %s21, 0
      %p62 = por %p60, %p61
      %p63 = scmp.ne.s32.totalorder %s55, %s57
      %p64 = scmp.eq.s32.totalorder %s26, 3
      %p65 = por %p63, %p64
      %p66 = scmp.ne.s32.totalorder %s57, %s58
      %p67 = scmp.eq.s32.totalorder %s26, 0
      %p68 = por %p66, %p67
      %p69 = scmp.ne.s32.totalorder %s57, %s58
      %p70 = scmp.eq.s32.totalorder %s27, 3
      %p71 = por %p69, %p70
      %p73 = scmp.ne.s32.totalorder %s58, %s72
      %p74 = scmp.eq.s32.totalorder %s27, 0
      %p75 = por %p73, %p74
      %s77 = sadd.s32 %s76, 1
      %p80 = scmp.eq.s32.totalorder %s21, 3
      %p81 = scmp.ne.s32.totalorder %s76, %s78
      %p82 = scmp.eq.s32.totalorder %s21, 0
      %p83 = por %p81, %p82
      %p84 = scmp.ne.s32.totalorder %s76, %s78
      %p85 = scmp.eq.s32.totalorder %s26, 3
      %p86 = por %p84, %p85
      %p87 = scmp.ne.s32.totalorder %s78, %s79
      %p88 = scmp.eq.s32.totalorder %s26, 0
      %p89 = por %p87, %p88
      %p90 = scmp.ne.s32.totalorder %s78, %s79
      %p91 = scmp.eq.s32.totalorder %s27, 3
      %p92 = por %p90, %p91
      %p94 = scmp.ne.s32.totalorder %s79, %s93
      %p95 = scmp.eq.s32.totalorder %s27, 0
      %p96 = por %p94, %p95
      %s97 = ssub.s32 %s21, %s28
      %p98 = scmp.eq.s32.totalorder %s97, 0
      %s100 = sadd.s32 %s99, 1
      %s101 = scalar_select %p98, %s99, %s100
      %p104 = pneg %p98
      %p105 = scmp.eq.s32.totalorder %s21, 3
      %p106 = por %p104, %p105
      %p107 = scmp.ne.s32.totalorder %s99, %s102
      %p108 = scmp.eq.s32.totalorder %s21, 0
      %p109 = por %p107, %p108
      %p110 = scmp.ne.s32.totalorder %s99, %s102
      %p111 = scmp.eq.s32.totalorder %s26, 3
      %p112 = por %p110, %p111
      %p113 = scmp.ne.s32.totalorder %s102, %s103
      %p114 = scmp.eq.s32.totalorder %s26, 0
      %p115 = por %p113, %p114
      %p116 = scmp.ne.s32.totalorder %s102, %s103
      %p117 = scmp.eq.s32.totalorder %s27, 3
      %p118 = por %p116, %p117
      %p120 = scmp.ne.s32.totalorder %s103, %s119
      %p121 = scmp.eq.s32.totalorder %s27, 0
      %p122 = por %p120, %p121
      %s123 = ssub.s32 %s21, %s28
      %p124 = scmp.eq.s32.totalorder %s123, 0
      %s126 = sadd.s32 %s125, 1
      %s127 = scalar_select %p124, %s125, %s126
      %p130 = pneg %p124
      %p131 = scmp.eq.s32.totalorder %s21, 3
      %p132 = por %p130, %p131
      %p133 = scmp.ne.s32.totalorder %s125, %s128
      %p134 = scmp.eq.s32.totalorder %s21, 0
      %p135 = por %p133, %p134
      %p136 = scmp.ne.s32.totalorder %s125, %s128
      %p137 = scmp.eq.s32.totalorder %s26, 3
      %p138 = por %p136, %p137
      %p139 = scmp.ne.s32.totalorder %s128, %s129
      %p140 = scmp.eq.s32.totalorder %s26, 0
      %p141 = por %p139, %p140
      %p142 = scmp.ne.s32.totalorder %s128, %s129
      %p143 = scmp.eq.s32.totalorder %s27, 3
      %p144 = por %p142, %p143
      %p146 = scmp.ne.s32.totalorder %s129, %s145
      %p147 = scmp.eq.s32.totalorder %s27, 0
      %p148 = por %p146, %p147
      %p149 = scmp.le.s32.totalorder 1, %s21
      %p150 = scmp.lt.s32.totalorder %s21, 5
      %p151 = pnand %p149, %p150
      %p152 = pneg %p151
      // Predicated region
      $region9: #{resnet_forward.6} parent=5 // pred_check
        _
      $region10: #{resnet_forward.6} parent=5 // pred_check_branch
        %154 = sbr.rel (%p151) target = $region12
      $region11: #{resnet_forward.6} parent=5 // pred_region
        %s155 = ssub.s32 %s21, 1
        // Predicated region
        $region13: #{resnet_forward.6} parent=11 // pred_check
          %p156 = pneg %p68
        $region14: #{resnet_forward.6} parent=11 // pred_check_branch
          %158 = sbr.rel (%p156) target = $region16
        $region15: #{resnet_forward.6} parent=11 // pred_region
          %s160 = ssub.s32 4096, 4096
          %161 = vsyncadd [#allocation6], %s160
          %s162 = sshll.u32 [#allocation5], 4
          %s163 = int_to_ptr.vmem [resolvable:$true] %s162
          %168 = dma.hbm_to_vmem [thread:$0]  %s1, 4096, %s163, [#allocation6], 128, 128, 8
        $region16: #{resnet_forward.6} parent=11 // pred_fallthru
          _
        // Predicated region
        $region17: #{resnet_forward.6} parent=11 // pred_check
          %p169 = pneg %p89
        $region18: #{resnet_forward.6} parent=11 // pred_check_branch
          %171 = sbr.rel (%p169) target = $region20
        $region19: #{resnet_forward.6} parent=11 // pred_region
          %s173 = ssub.s32 16, 16
          %174 = vsyncadd [#allocation6], %s173
          %s176 = sshll.u32 [#allocation7], 4
          %s177 = int_to_ptr.vmem [resolvable:$true] %s176
          %179 = dma.hbm_to_vmem [thread:$0]  %s2, 16, %s177, [#allocation6]
        $region20: #{resnet_forward.6} parent=11 // pred_fallthru
          _
      $region12: #{resnet_forward.6} parent=5 // pred_fallthru
        _
      %p180 = scmp.lt.s32.totalorder %s21, 4
      // Predicated region
      $region21: #{resnet_forward.6} parent=5 // pred_check
        %p181 = pneg %p180
      $region22: #{resnet_forward.6} parent=5 // pred_check_branch
        %183 = sbr.rel (%p181) target = $region24
      $region23: #{resnet_forward.6} parent=5 // pred_region
        // Predicated region
        $region25: #{resnet_forward.6} parent=23 // pred_check
          %p184 = pneg %p41
        $region26: #{resnet_forward.6} parent=23 // pred_check_branch
          %186 = sbr.rel (%p184) target = $region28
        $region27: #{resnet_forward.6} parent=23 // pred_region
          %s187 = sand.u32 %s31, 1
          %s188 = scalar_lea.sflag [#allocation3], %s187
          %s189 = sand.u32 %s31, 1
          %s190 = smul.addr %s189, 80
          %s191 = scalar_lea.vmem [#allocation2], %s190
          %s192 = smul.u32 2, %s21
          %s194 = ssub.s32 1280, 1280
          %195 = vsyncadd %s188, %s194
          %s196 = smul.addr %s192, 5
          %s197 = smul.addr %s196, 128
          %s198 = scalar_lea.hbm %s0, %s197
          %s199 = sshll.u32 %s191, 4
          %s200 = int_to_ptr.vmem [resolvable:$true] %s199
          %205 = dma.hbm_to_vmem [thread:$0]  %s198, 1280, %s200, %s188, 128, 128, 8
        $region28: #{resnet_forward.6} parent=23 // pred_fallthru
          _
      $region24: #{resnet_forward.6} parent=5 // pred_fallthru
        _
      %p206 = scmp.le.s32.totalorder 1, %s21
      %p207 = scmp.lt.s32.totalorder %s21, 5
      %p208 = pnand %p206, %p207
      %p209 = pneg %p208
      // Predicated region
      $region29: #{resnet_forward.6} parent=5 // pred_check
        _
      $region30: #{resnet_forward.6} parent=5 // pred_check_branch
        %211 = sbr.rel (%p208) target = $region32
      $region31: #{resnet_forward.6} parent=5 // pred_region
        %s212 = ssub.s32 %s21, 1
        %s213 = sand.u32 %s34, 1
        %s214 = scalar_lea.sflag [#allocation3], %s213
        %s215 = sand.u32 %s34, 1
        %s216 = smul.addr %s215, 80
        %s217 = scalar_lea.vmem [#allocation2], %s216
        // Predicated region
        $region33: #{resnet_forward.6} parent=31 // pred_check
          %p218 = pneg %p47
        $region34: #{resnet_forward.6} parent=31 // pred_check_branch
          %220 = sbr.rel (%p218) target = $region36
        $region35: #{resnet_forward.6} parent=31 // pred_region
          %221 = dma.done %s214, 1280
        $region36: #{resnet_forward.6} parent=31 // pred_fallthru
          _
        // Predicated region
        $region37: #{resnet_forward.6} parent=31 // pred_check
          %p222 = pneg %p68
        $region38: #{resnet_forward.6} parent=31 // pred_check_branch
          %224 = sbr.rel (%p222) target = $region40
        $region39: #{resnet_forward.6} parent=31 // pred_region
          %225 = dma.done [#allocation6], 4096
        $region40: #{resnet_forward.6} parent=31 // pred_fallthru
          _
        // Predicated region
        $region41: #{resnet_forward.6} parent=31 // pred_check
          %p226 = pneg %p89
        $region42: #{resnet_forward.6} parent=31 // pred_check_branch
          %228 = sbr.rel (%p226) target = $region44
        $region43: #{resnet_forward.6} parent=31 // pred_region
          %229 = dma.done [#allocation6], 16
        $region44: #{resnet_forward.6} parent=31 // pred_fallthru
          _
        %s230 = sand.u32 %s34, 1
        %s231 = scalar_lea.sflag [#allocation3], %s230
        %s232 = sand.u32 %s34, 1
        %s233 = smul.addr %s232, 80
        %s234 = scalar_lea.vmem [#allocation2], %s233
        %p235 = pneg %p47
        %p236 = pneg %p44
        %p237 = pneg %p68
        %p238 = pneg %p65
        %p239 = pneg %p89
        %p240 = pneg %p86
        %p241 = pneg %p115
        %p242 = pneg %p112
        %s243 = sand.u32 %s102, 1
        %s244 = scalar_lea.sflag [#allocation4], %s243
        %s245 = sand.u32 %s102, 1
        %s246 = smul.addr %s245, 32
        %s247 = scalar_lea.vmem [#allocation8], %s246
        %p248 = pneg %p141
        %p249 = pneg %p138
        %s250 = sand.u32 %s128, 1
        %s251 = scalar_lea.sflag [#allocation10], %s250
        %s252 = sand.u32 %s128, 1
        %s253 = smul.addr %s252, 2
        %s254 = scalar_lea.vmem [#allocation9], %s253
        %s255 = smul.u32 2, %s26
        %s256 = smul.u32 2, %s26
        %v257 = vld [vmem:[%s217] sm:$0xf]
        %v258 = vld [vmem:[%s217 + $0x8] sm:$0xf]
        %v259 = vld [vmem:[%s217 + $0x10] sm:$0xf]
        %v260 = vld [vmem:[%s217 + $0x18] sm:$0xf]
        %v261 = vld [vmem:[%s217 + $0x28] sm:$0xf]
        %v262 = vld [vmem:[%s217 + $0x30] sm:$0xf]
        %v263 = vld [vmem:[%s217 + $0x38] sm:$0xf]
        %v264 = vld [vmem:[%s217 + $0x40] sm:$0xf]
        %v265 = vld [vmem:[%s217 + $0x1] sm:$0xf]
        %v266 = vld [vmem:[%s217 + $0x9] sm:$0xf]
        %v267 = vld [vmem:[%s217 + $0x11] sm:$0xf]
        %v268 = vld [vmem:[%s217 + $0x19] sm:$0xf]
        %v269 = vld [vmem:[%s217 + $0x29] sm:$0xf]
        %v270 = vld [vmem:[%s217 + $0x31] sm:$0xf]
        %v271 = vld [vmem:[%s217 + $0x39] sm:$0xf]
        %v272 = vld [vmem:[%s217 + $0x41] sm:$0xf]
        %s273 = scalar_lea.vmem %s217, 8 [#allocation2]
        %v274 = vld [vmem:[%s273] sm:$0xf]
        %v275 = vld [vmem:[%s273 + $0x8] sm:$0xf]
        %v276 = vld [vmem:[%s273 + $0x10] sm:$0xf]
        %v277 = vld [vmem:[%s273 + $0x18] sm:$0xf]
        %v278 = vld [vmem:[%s273 + $0x28] sm:$0xf]
        %v279 = vld [vmem:[%s273 + $0x30] sm:$0xf]
        %v280 = vld [vmem:[%s273 + $0x38] sm:$0xf]
        %v281 = vld [vmem:[%s273 + $0x40] sm:$0xf]
        %v282 = vld [vmem:[%s273 + $0x1] sm:$0xf]
        %v283 = vld [vmem:[%s273 + $0x9] sm:$0xf]
        %v284 = vld [vmem:[%s273 + $0x11] sm:$0xf]
        %v285 = vld [vmem:[%s273 + $0x19] sm:$0xf]
        %v286 = vld [vmem:[%s273 + $0x29] sm:$0xf]
        %v287 = vld [vmem:[%s273 + $0x31] sm:$0xf]
        %v288 = vld [vmem:[%s273 + $0x39] sm:$0xf]
        %v289 = vld [vmem:[%s273 + $0x41] sm:$0xf]
        %v298 = vcombine.low %v257, %v258
        %v299 = vcombine.low %v259, %v260
        %v300 = vcombine.low %v261, %v262
        %v301 = vcombine.low %v263, %v264
        %v314 = vcombine.low %v265, %v266
        %v315 = vcombine.low %v267, %v268
        %v316 = vcombine.low %v269, %v270
        %v317 = vcombine.low %v271, %v272
        %318 = vrot.lane.b32.xlu0 %v314, 64
        %v319 = vpop.permute.xlu0 %318
        %320 = vrot.lane.b32.xlu0 %v315, 64
        %v321 = vpop.permute.xlu0 %320
        %322 = vrot.lane.b32.xlu0 %v316, 64
        %v323 = vpop.permute.xlu0 %322
        %324 = vrot.lane.b32.xlu0 %v317, 64
        %v325 = vpop.permute.xlu0 %324
        %v338 = vcombine.low %v274, %v275
        %v339 = vcombine.low %v276, %v277
        %v340 = vcombine.low %v278, %v279
        %v341 = vcombine.low %v280, %v281
        %v354 = vcombine.low %v282, %v283
        %v355 = vcombine.low %v284, %v285
        %v356 = vcombine.low %v286, %v287
        %v357 = vcombine.low %v288, %v289
        %358 = vrot.lane.b32.xlu0 %v354, 64
        %v359 = vpop.permute.xlu0 %358
        %360 = vrot.lane.b32.xlu0 %v355, 64
        %v361 = vpop.permute.xlu0 %360
        %362 = vrot.lane.b32.xlu0 %v356, 64
        %v363 = vpop.permute.xlu0 %362
        %364 = vrot.lane.b32.xlu0 %v357, 64
        %v365 = vpop.permute.xlu0 %364
        %vm370 = vcmask 523264
        %v371 = vsel %vm370, %v298, %v319
        %v372 = vsel %vm370, %v299, %v321
        %v373 = vsel %vm370, %v300, %v323
        %v374 = vsel %vm370, %v301, %v325
        %v375 = vsel %vm370, %v338, %v359
        %v376 = vsel %vm370, %v339, %v361
        %v377 = vsel %vm370, %v340, %v363
        %v378 = vsel %vm370, %v341, %v365
        %v379 = vld [vmem:[#allocation5] sm:$0xff]
        %v380 = vld [vmem:[#allocation5 + $0x8] sm:$0xff]
        %v381 = vld [vmem:[#allocation5 + $0x10] sm:$0xff]
        %v382 = vld [vmem:[#allocation5 + $0x18] sm:$0xff]
        %v383 = vld [vmem:[#allocation5 + $0x20] sm:$0xff]
        %v384 = vld [vmem:[#allocation5 + $0x28] sm:$0xff]
        %v385 = vld [vmem:[#allocation5 + $0x30] sm:$0xff]
        %v386 = vld [vmem:[#allocation5 + $0x38] sm:$0xff]
        %v387 = vld [vmem:[#allocation5 + $0x40] sm:$0xff]
        %v388 = vld [vmem:[#allocation5 + $0x48] sm:$0xff]
        %v389 = vld [vmem:[#allocation5 + $0x50] sm:$0xff]
        %v390 = vld [vmem:[#allocation5 + $0x58] sm:$0xff]
        %v391 = vld [vmem:[#allocation5 + $0x60] sm:$0xff]
        %v392 = vld [vmem:[#allocation5 + $0x68] sm:$0xff]
        %v393 = vld [vmem:[#allocation5 + $0x70] sm:$0xff]
        %v394 = vld [vmem:[#allocation5 + $0x78] sm:$0xff]
        %v395 = vld [vmem:[#allocation5 + $0x80] sm:$0xff]
        %v396 = vld [vmem:[#allocation5 + $0x88] sm:$0xff]
        %v397 = vld [vmem:[#allocation5 + $0x90] sm:$0xff]
        %v398 = vld [vmem:[#allocation5 + $0x98] sm:$0xff]
        %v399 = vld [vmem:[#allocation5 + $0xa0] sm:$0xff]
        %v400 = vld [vmem:[#allocation5 + $0xa8] sm:$0xff]
        %v401 = vld [vmem:[#allocation5 + $0xb0] sm:$0xff]
        %v402 = vld [vmem:[#allocation5 + $0xb8] sm:$0xff]
        %v403 = vld [vmem:[#allocation5 + $0xc0] sm:$0xff]
        %v404 = vld [vmem:[#allocation5 + $0xc8] sm:$0xff]
        %v405 = vld [vmem:[#allocation5 + $0xd0] sm:$0xff]
        %v406 = vld [vmem:[#allocation5 + $0xd8] sm:$0xff]
        %v407 = vld [vmem:[#allocation5 + $0xe0] sm:$0xff]
        %v408 = vld [vmem:[#allocation5 + $0xe8] sm:$0xff]
        %v409 = vld [vmem:[#allocation5 + $0xf0] sm:$0xff]
        %v410 = vld [vmem:[#allocation5 + $0xf8] sm:$0xff]
        %v411 = vld [vmem:[#allocation7] sm:$0x1]
        %v413 = vlaneseq
        %v414 = vshrl.u32 %v413, 7
        %v415 = vsub.s32 0, %v414
        %v416 = vrot.slane %v411, %v415
        %418 = vmatprep.subr.mxu0 0.0
        %419 = vmatpush1.msra.mxu0 %v379
        %420 = vmatprep.subr.mxu0 0.0
        %421 = vmatpush1.msra.mxu0 %v380
        %422 = vmatprep.subr.mxu0 0.0
        %423 = vmatpush1.msra.mxu0 %v381
        %424 = vmatprep.subr.mxu0 0.0
        %425 = vmatpush1.msra.mxu0 %v382
        %426 = vmatprep.subr.mxu0 0.0
        %427 = vmatpush1.msra.mxu0 %v383
        %428 = vmatprep.subr.mxu0 0.0
        %429 = vmatpush1.msra.mxu0 %v384
        %430 = vmatprep.subr.mxu0 0.0
        %431 = vmatpush1.msra.mxu0 %v385
        %432 = vmatprep.subr.mxu0 0.0
        %433 = vmatpush1.msra.mxu0 %v386
        %434 = vmatprep.subr.mxu0 0.0
        %435 = vmatpush1.msra.mxu0 %v387
        %436 = vmatprep.subr.mxu0 0.0
        %437 = vmatpush1.msra.mxu0 %v388
        %438 = vmatprep.subr.mxu0 0.0
        %439 = vmatpush1.msra.mxu0 %v389
        %440 = vmatprep.subr.mxu0 0.0
        %441 = vmatpush1.msra.mxu0 %v390
        %442 = vmatprep.subr.mxu0 0.0
        %443 = vmatpush1.msra.mxu0 %v391
        %444 = vmatprep.subr.mxu0 0.0
        %445 = vmatpush1.msra.mxu0 %v392
        %446 = vmatprep.subr.mxu0 0.0
        %447 = vmatpush1.msra.mxu0 %v393
        %448 = vmatprep.subr.mxu0 0.0
        %449 = vmatpush1.msra.mxu0 %v394
        %450 = vmatprep.subr.mxu0 0.0
        %451 = vmatpush1.msra.mxu0 %v395
        %452 = vmatprep.subr.mxu0 0.0
        %453 = vmatpush1.msra.mxu0 %v396
        %454 = vmatprep.subr.mxu0 0.0
        %455 = vmatpush1.msra.mxu0 %v397
        %456 = vmatprep.subr.mxu0 0.0
        %457 = vmatpush1.msra.mxu0 %v398
        %458 = vmatprep.subr.mxu0 0.0
        %459 = vmatpush1.msra.mxu0 %v399
        %460 = vmatprep.subr.mxu0 0.0
        %461 = vmatpush1.msra.mxu0 %v400
        %462 = vmatprep.subr.mxu0 0.0
        %463 = vmatpush1.msra.mxu0 %v401
        %464 = vmatprep.subr.mxu0 0.0
        %465 = vmatpush1.msra.mxu0 %v402
        %466 = vmatprep.subr.mxu0 0.0
        %467 = vmatpush1.msra.mxu0 %v403
        %468 = vmatprep.subr.mxu0 0.0
        %469 = vmatpush1.msra.mxu0 %v404
        %470 = vmatprep.subr.mxu0 0.0
        %471 = vmatpush1.msra.mxu0 %v405
        %472 = vmatprep.subr.mxu0 0.0
        %473 = vmatpush1.msra.mxu0 %v406
        %474 = vmatprep.subr.mxu0 0.0
        %475 = vmatpush1.msra.mxu0 %v407
        %476 = vmatprep.subr.mxu0 0.0
        %477 = vmatpush1.msra.mxu0 %v408
        %478 = vmatprep.subr.mxu0 0.0
        %479 = vmatpush1.msra.mxu0 %v409
        %480 = vmatprep.subr.mxu0 0.0
        %481 = vmatpush1.msra.mxu0 %v410
        %482 = vmatprep.mubr.f32.mxu0 %v375
        %483 = vmatmul.mubr.f32.gmra.mrb[0].mxu0 %v371
        %v484 = vpop.f32.mrb[0].mxu0
        %v485 = vadd.f32 %v416, %v484
        %v486 = vpop.f32.mrb[0].mxu0
        %487 = vmatprep.mubr.f32.mxu0 %v376
        %488 = vmatmul.mubr.f32.gmra.mrb[0].mxu0 %v372
        %v489 = vpop.f32.mrb[0].mxu0
        %v490 = vadd.f32 %v416, %v489
        %v491 = vpop.f32.mrb[0].mxu0
        %492 = vmatprep.mubr.f32.mxu0 %v377
        %493 = vmatmul.mubr.f32.gmra.mrb[0].mxu0 %v373
        %v494 = vpop.f32.mrb[0].mxu0
        %v495 = vadd.f32 %v416, %v494
        %v496 = vpop.f32.mrb[0].mxu0
        %497 = vmatprep.mubr.f32.mxu0 %v378
        %498 = vmatmul.mubr.f32.gmra.mrb[0].mxu0 %v374
        %v499 = vpop.f32.mrb[0].mxu0
        %v500 = vadd.f32 %v416, %v499
        %v501 = vpop.f32.mrb[0].mxu0
        %502 = vdwg.mxu0
        %vm503 = vcmask 130048
        %504 = vst.msk [vmem:[%s247] sm:$0xff] %vm503, %v485
        %505 = vst.msk [vmem:[%s247 + $0x8] sm:$0xff] %vm503, %v490
        %506 = vst.msk [vmem:[%s247 + $0x10] sm:$0xff] %vm503, %v495
        %507 = vst.msk [vmem:[%s247 + $0x18] sm:$0xff] %vm503, %v500
        %v508 = vsel %vm503, %v485, 0.0
        %v509 = vsel %vm503, %v490, 0.0
        %v510 = vadd.f32 %v508, %v509
        %v511 = vsel %vm503, %v495, 0.0
        %v512 = vadd.f32 %v510, %v511
        %v513 = vsel %vm503, %v500, 0.0
        %v514 = vadd.f32 %v512, %v513
        %v515 = vrot.slane %v514, 4
        %v516 = vadd.f32 %v514, %v515
        %v517 = vrot.slane %v516, 2
        %v518 = vadd.f32 %v516, %v517
        %v519 = vrot.slane %v518, 1
        %v520 = vadd.f32 %v518, %v519
        %v521 = vmul.f32 %v520, 0.03125
        %v522 = vsub.f32 %v485, %v521
        %v523 = vsub.f32 %v490, %v521
        %v524 = vsub.f32 %v495, %v521
        %v525 = vsub.f32 %v500, %v521
        %v526 = vmul.f32 %v522, %v522
        %v527 = vmul.f32 %v523, %v523
        %v528 = vmul.f32 %v524, %v524
        %v529 = vmul.f32 %v525, %v525
        %v530 = vsel %vm503, %v526, 0.0
        %v531 = vsel %vm503, %v527, 0.0
        %v532 = vadd.f32 %v530, %v531
        %v533 = vsel %vm503, %v528, 0.0
        %v534 = vadd.f32 %v532, %v533
        %v535 = vsel %vm503, %v529, 0.0
        %v536 = vadd.f32 %v534, %v535
        %v537 = vrot.slane %v536, 4
        %v538 = vadd.f32 %v536, %v537
        %v539 = vrot.slane %v538, 2
        %v540 = vadd.f32 %v538, %v539
        %v541 = vrot.slane %v540, 1
        %v542 = vadd.f32 %v540, %v541
        %vm543 = vcmask 1040384
        %v544 = vsel %vm543, %v520, %v542
        %vm545 = vcmask 123904
        %546 = vst.msk [vmem:[%s254] sm:$0x3] %vm545, %v544
        %s547 = sand.u32 %s102, 1
        %s548 = scalar_lea.sflag [#allocation4], %s547
        %s549 = sand.u32 %s102, 1
        %s550 = smul.addr %s549, 32
        %s551 = scalar_lea.vmem [#allocation8], %s550
        %s552 = sand.u32 %s128, 1
        %s553 = scalar_lea.sflag [#allocation10], %s552
        %s554 = sand.u32 %s128, 1
        %s555 = smul.addr %s554, 2
        %s556 = scalar_lea.vmem [#allocation9], %s555
        // Predicated region
        $region45: #{resnet_forward.6} parent=31 // pred_check
          %p557 = pneg %p112
        $region46: #{resnet_forward.6} parent=31 // pred_check_branch
          %559 = sbr.rel (%p557) target = $region48
        $region47: #{resnet_forward.6} parent=31 // pred_region
          %s560 = smul.u32 2, %s26
          %s562 = ssub.s32 512, 512
          %563 = vsyncadd %s548, %s562
          %s564 = smul.addr %s560, 2
          %s565 = smul.addr %s564, 128
          %s566 = scalar_lea.hbm %s3, %s565
          %s567 = sshll.u32 %s551, 4
          %s568 = int_to_ptr.vmem [resolvable:$true] %s567
          %573 = dma.vmem_to_hbm [thread:$0]  %s568, 512, %s566, %s548, 128, 128, 8
        $region48: #{resnet_forward.6} parent=31 // pred_fallthru
          _
        // Predicated region
        $region49: #{resnet_forward.6} parent=31 // pred_check
          %p574 = pneg %p138
        $region50: #{resnet_forward.6} parent=31 // pred_check_branch
          %576 = sbr.rel (%p574) target = $region52
        $region51: #{resnet_forward.6} parent=31 // pred_region
          %s578 = ssub.s32 32, 32
          %579 = vsyncadd %s553, %s578
          %s580 = smul.addr %s26, 32
          %s581 = scalar_lea.hbm %s4, %s580
          %s583 = sshll.u32 %s556, 4
          %s584 = int_to_ptr.vmem [resolvable:$true] %s583
          %586 = dma.vmem_to_hbm [thread:$0]  %s584, 32, %s581, %s553
        $region52: #{resnet_forward.6} parent=31 // pred_fallthru
          _
      $region32: #{resnet_forward.6} parent=5 // pred_fallthru
        _
      %p587 = scmp.le.s32.totalorder 2, %s21
      // Predicated region
      $region53: #{resnet_forward.6} parent=5 // pred_check
        %p588 = pneg %p587
      $region54: #{resnet_forward.6} parent=5 // pred_check_branch
        %590 = sbr.rel (%p588) target = $region56
      $region55: #{resnet_forward.6} parent=5 // pred_region
        %s591 = ssub.s32 %s21, 2
        // Predicated region
        $region57: #{resnet_forward.6} parent=55 // pred_check
          %p592 = pneg %p118
        $region58: #{resnet_forward.6} parent=55 // pred_check_branch
          %594 = sbr.rel (%p592) target = $region60
        $region59: #{resnet_forward.6} parent=55 // pred_region
          %s595 = sand.u32 %s103, 1
          %s596 = scalar_lea.sflag [#allocation4], %s595
          %s597 = sand.u32 %s103, 1
          %s598 = smul.addr %s597, 32
          %s599 = scalar_lea.vmem [#allocation8], %s598
          %600 = dma.done %s596, 512
        $region60: #{resnet_forward.6} parent=55 // pred_fallthru
          _
        // Predicated region
        $region61: #{resnet_forward.6} parent=55 // pred_check
          %p601 = pneg %p144
        $region62: #{resnet_forward.6} parent=55 // pred_check_branch
          %603 = sbr.rel (%p601) target = $region64
        $region63: #{resnet_forward.6} parent=55 // pred_region
          %s604 = sand.u32 %s129, 1
          %s605 = scalar_lea.sflag [#allocation10], %s604
          %s606 = sand.u32 %s129, 1
          %s607 = smul.addr %s606, 2
          %s608 = scalar_lea.vmem [#allocation9], %s607
          %609 = dma.done %s605, 32
        $region64: #{resnet_forward.6} parent=55 // pred_fallthru
          _
      $region56: #{resnet_forward.6} parent=5 // pred_fallthru
        _
    $region6: #{resnet_forward.6} parent=1 // loop_footer
      %s25 = sadd.s32 1, %s21
    $region7: #{resnet_forward.6} parent=1 // loop_footer_branch
      %20 = sbr.rel target = $region3
    $region8: #{resnet_forward.6} parent=1 // loop_exit
      _
    %610 = vsyncpa [#allocation3], 1
    %s611 = scalar_lea.sflag [#allocation3], 1
    %612 = vsyncpa %s611, 1
    %613 = vsyncpa [#allocation6], 1
    %614 = vsyncpa [#allocation4], 1
    %s615 = scalar_lea.sflag [#allocation4], 1
    %616 = vsyncpa %s615, 1
    %617 = vsyncpa [#allocation10], 1
    %s618 = scalar_lea.sflag [#allocation10], 1
    %619 = vsyncpa %s618, 1

</llo_original>
